<compile_context>
chip_gen: v6e
topology: v6e:2x2x1
jax: 0.10.0
libtpu: 0.0.40
codegen_flags: <defaults>
</compile_context>

<pallas_src>
import functools

import numpy as np
import jax
import jax.numpy as jnp
from jax.experimental import pallas as pl
from jax.experimental.pallas import tpu as pltpu

_BN_EPS = 1e-5


def _attn_ds_kernel(x_ref, wqkv_ref, bqkv_ref, hq_ref, hv_ref, g_ref, wl_ref,
                    bl_ref, wp_ref, bp_ref, o_ref,
                    *, bb, n_tok, num_heads, nh_kd, scale):
    """One grid step == `bb` batch elements; channels sit on the lane axis."""
    n = n_tok
    f32 = jnp.float32
    bf16 = jnp.bfloat16

    # Flatten the (bb, n, C) activation block into (bb*n, C) rows via slices +
    # concat (no in-kernel reshape) so the shared 1x1-conv matmuls run with a
    # large M that fills the MXU and amortizes per-grid-step overhead.
    if bb == 1:
        x2 = x_ref[0]
    else:
        x2 = jnp.concatenate([x_ref[b] for b in range(bb)], axis=0)

    # q / k / v 1x1 convs (+ folded BN) fused into ONE channel matmul.
    qkv = jnp.dot(x2, wqkv_ref[...], preferred_element_type=f32) + bqkv_ref[...]
    q = qkv[:, :nh_kd]                                  # f32 (masked below)
    k = qkv[:, nh_kd:2 * nh_kd].astype(bf16)
    v = qkv[:, 2 * nh_kd:].astype(bf16)

    hq = hq_ref[...]          # (heads, nh_kd) 0/1 head mask for q channels
    hv = hv_ref[...]          # (heads, dh)    0/1 head mask for v channels
    gst = g_ref[...]          # (9n, n) 0/1 tap gather (stride-2/pad-1 dw conv)
    wl = wl_ref[...]          # (9, dh) per-tap depthwise weights (BN folded)
    bl = bl_ref[...]          # (1, dh) folded depthwise bias

    pre_parts = []
    for b in range(bb):
        r0 = b * n
        qb = q[r0:r0 + n, :]
        kb = k[r0:r0 + n, :]
        vb = v[r0:r0 + n, :]

        # All heads' QK^T in a single full-contraction matmul: the head index
        # rides the M (sublane) axis, so softmax is a plain per-row softmax
        # and no per-head lane slicing / masked stores are needed.
        qstack = jnp.concatenate(
            [qb * hq[h:h + 1, :] for h in range(num_heads)], axis=0)  # (heads*n, nh_kd)
        logits = jax.lax.dot_general(
            qstack.astype(bf16), kb, (((1,), (1,)), ((), ())),
            preferred_element_type=f32) * scale                       # (heads*n, n)
        logits = logits - jnp.max(logits, axis=-1, keepdims=True)
        e = jnp.exp(logits)
        p = e * pl.reciprocal(jnp.sum(e, axis=-1, keepdims=True), approx=True)

        # All heads' attn @ v in one matmul; keep head h's channel block from
        # row group h with a cheap lane-dense VPU select-accumulate.
        xa = jnp.dot(p.astype(bf16), vb, preferred_element_type=f32)  # (heads*n, dh)
        x_attn = xa[0:n, :] * hv[0:1, :]
        for h in range(1, num_heads):
            x_attn = x_attn + xa[h * n:(h + 1) * n, :] * hv[h:h + 1, :]

        # v_local: depthwise 3x3 / stride-2 / pad-1 conv (+ folded BN and the
        # PyTorch broadcast onto the (res, res) grid) == ONE 0/1 gather matmul
        # over all 9 taps, then per-tap per-channel scale-accumulate (VPU).
        y = jnp.dot(gst, vb, preferred_element_type=f32)              # (9n, dh)
        v_loc = y[0:n, :] * wl[0:1, :]
        for t in range(1, 9):
            v_loc = v_loc + y[t * n:(t + 1) * n, :] * wl[t:t + 1, :]
        v_loc = v_loc + bl

        pre_parts.append(jnp.maximum(x_attn + v_loc, 0.0))            # ReLU

    pre = pre_parts[0] if bb == 1 else jnp.concatenate(pre_parts, axis=0)

    # proj 1x1 conv (+ folded BN): again one big-M matmul over the whole block.
    out = jnp.dot(pre.astype(bf16), wp_ref[...],
                  preferred_element_type=f32) + bp_ref[...]
    out = out.astype(o_ref.dtype)
    for b in range(bb):
        o_ref[b] = out[b * n:(b + 1) * n, :]


def _fold_conv_bn(w, b, gamma, beta, mean, var):
    s = gamma / jnp.sqrt(var + _BN_EPS)
    return w * s[:, None], (b - mean) * s + beta


def _build_tap_gather(H, W, res, Ho, Wo):
    """(9*res*res, H*W) 0/1 matrix: row (tap t, output token n) -> input pixel.

    Includes the PyTorch broadcast of v_local onto the (res, res) grid."""
    N = res * res
    g = np.zeros((9, N, H * W), dtype=np.float32)
    for t in range(9):
        di, dj = t // 3, t % 3
        for io in range(res):
            for jo in range(res):
                il = io if Ho == res else 0      # broadcast of v_local
                jl = jo if Wo == res else 0
                ii = 2 * il - 1 + di             # stride 2, padding 1
                jj = 2 * jl - 1 + dj
                if 0 <= ii < H and 0 <= jj < W:
                    g[t, io * res + jo, ii * W + jj] = 1.0
    return g.reshape(9 * N, H * W)


def _head_mask(num_heads, width):
    return np.kron(np.eye(num_heads, dtype=np.float32),
                   np.ones((1, width), np.float32))


def _pick_block_b(B, N, C, nh_kd, dh, num_heads,
                  target_rows=512, vmem_budget=24 * 1024 * 1024):
    """Largest divisor of B that fills the MXU M dimension, keeps >= 2 grid
    steps (v7x megacore) and stays well inside the default scoped VMEM."""
    qkv_cols = 2 * nh_kd + dh

    def est_bytes(bb):
        rows = bb * N
        blk = 2 * rows * C * (2 + 4)                       # x (bf16) + out (f32), double buffered
        blk += 4 * rows * (qkv_cols + dh + C)              # qkv / pre / out block values
        per_b = 4 * (2 * num_heads * N * N
                     + num_heads * N * (nh_kd + dh)
                     + 9 * N * dh)
        wts = 4 * (C * qkv_cols + dh * C + 9 * N * N) \
            + 4 * (qkv_cols + 2 * dh + C + num_heads * (nh_kd + dh))
        return blk + 2 * per_b + wts

    cap = max(1, target_rows // max(N, 1))
    if B >= 2:
        cap = min(cap, max(1, B // 2))                     # keep grid >= 2
    best = 1
    for cand in range(1, min(B, cap) + 1):
        if B % cand == 0 and est_bytes(cand) <= vmem_budget:
            best = cand
    return best


def attention4d_downsample_tokens(x_nlc, hw, params, *, num_heads, key_dim,
                                  attn_ratio, resolution, block_b=None):
    """Token-major core: x_nlc is (B, N, C) with N = H*W.  Callers that keep a
    token-major activation layout across layers avoid the NCHW boundary
    transposes entirely."""
    B, N, C = x_nlc.shape
    H, W = hw
    d = int(attn_ratio * key_dim)
    dh = d * num_heads
    nh_kd = num_heads * key_dim
    res = resolution
    if H * W != N or N != res * res:
        raise ValueError("module reshape requires H*W == resolution**2")
    Ho, Wo = (H + 1) // 2, (W + 1) // 2
    if Ho not in (1, res) or Wo not in (1, res):
        raise ValueError("x_attn + v_local is not broadcastable for this input shape")

    out_dtype = x_nlc.dtype

    # Fold eval-mode BatchNorm into the convs (host side, tiny).
    wq, bq = _fold_conv_bn(params["wq"], params["bq"], *params["bnq"])
    wk, bk = _fold_conv_bn(params["wk"], params["bk"], *params["bnk"])
    wv, bv = _fold_conv_bn(params["wv"], params["bv"], *params["bnv"])
    wp, bp = _fold_conv_bn(params["wp"], params["bp"], *params["bnp"])

    gl, btl, ml, vrl = params["bnl"]
    sl = gl / jnp.sqrt(vrl + _BN_EPS)
    wl = (params["w_dw"].reshape(dh, 9) * sl[:, None]).T.astype(jnp.float32)   # (9, dh)
    bl = ((params["b_dw"] - ml) * sl + btl).reshape(1, dh).astype(jnp.float32)

    # MXU operands in bf16 (f32 accumulation in-kernel); elementwise stays f32.
    wqkv = jnp.concatenate([wq.T, wk.T, wv.T], axis=1).astype(jnp.bfloat16)    # (C, 2*nh_kd+dh)
    bqkv = jnp.concatenate([bq, bk, bv]).reshape(1, -1).astype(jnp.float32)
    wp_t = wp.T.astype(jnp.bfloat16)                                           # (dh, C)
    bp2 = bp.reshape(1, C).astype(jnp.float32)

    hq = jnp.asarray(_head_mask(num_heads, key_dim))                           # (heads, nh_kd)
    hv = jnp.asarray(_head_mask(num_heads, d))                                 # (heads, dh)
    gstack = jnp.asarray(_build_tap_gather(H, W, res, Ho, Wo), jnp.bfloat16)   # (9N, N)

    x_bf = x_nlc.astype(jnp.bfloat16)

    bb = block_b if block_b is not None else _pick_block_b(B, N, C, nh_kd, dh, num_heads)
    if B % bb != 0:
        raise ValueError(f"block_b={bb} must divide batch size {B}")
    grid = (B // bb,)

    weights = (wqkv, bqkv, hq, hv, gstack, wl, bl, wp_t, bp2)

    def _const_spec(a):
        nd = a.ndim
        # TODO(synk): pipeline_mode=pl.Buffered(1) would drop the second buffer
        # for these never-changing blocks; kept at the default for portability.
        return pl.BlockSpec(a.shape, lambda i, _n=nd: (0,) * _n)

    in_specs = [pl.BlockSpec((bb, N, C), lambda i: (i, 0, 0))]
    in_specs += [_const_spec(a) for a in weights]
    out_specs = pl.BlockSpec((bb, N, C), lambda i: (i, 0, 0))

    qkv_cols = 2 * nh_kd + dh
    flops = 2 * B * (N * C * qkv_cols
                     + num_heads * N * N * nh_kd
                     + num_heads * N * N * dh
                     + 9 * N * N * dh
                     + N * dh * C)
    bytes_accessed = (2 * B * N * C
                      + np.dtype(out_dtype).itemsize * B * N * C
                      + sum(int(np.prod(a.shape)) * a.dtype.itemsize for a in weights))

    kernel = functools.partial(
        _attn_ds_kernel, bb=bb, n_tok=N, num_heads=num_heads, nh_kd=nh_kd,
        scale=float(key_dim) ** -0.5)

    return pl.pallas_call(
        kernel,
        out_shape=jax.ShapeDtypeStruct((B, N, C), out_dtype),
        grid=grid,
        in_specs=in_specs,
        out_specs=out_specs,
        compiler_params=pltpu.CompilerParams(dimension_semantics=("parallel",)),
        cost_estimate=pl.CostEstimate(
            flops=int(flops),
            transcendentals=int(B * num_heads * N * N),
            bytes_accessed=int(bytes_accessed)),
    )(x_bf, *weights)


def attention4d_downsample(x, params, *, num_heads, key_dim, attn_ratio,
                           resolution, block_b=None):
    """NCHW wrapper matching the PyTorch module interface.  The two boundary
    transposes exist only because the module is NCHW; surrounding networks
    that keep a token-major layout should call attention4d_downsample_tokens
    directly (feedback: avoid round-tripping layout at the kernel boundary)."""
    B, C, H, W = x.shape
    x_nlc = jnp.transpose(x.reshape(B, C, H * W), (0, 2, 1))
    out_nlc = attention4d_downsample_tokens(
        x_nlc, (H, W), params, num_heads=num_heads, key_dim=key_dim,
        attn_ratio=attn_ratio, resolution=resolution, block_b=block_b)
    return jnp.transpose(out_nlc, (0, 2, 1)).reshape(B, C, resolution, resolution)


def _reference(x, params, *, num_heads, key_dim, attn_ratio, resolution):
    """Pure-JAX mirror of the PyTorch forward (eval-mode BN)."""
    B, C, H, W = x.shape
    d = int(attn_ratio * key_dim)
    dh = d * num_heads
    res = resolution
    N = res * res
    scale = float(key_dim) ** -0.5
    hp = jax.lax.Precision.HIGHEST

    def conv1x1_bn(inp, w, b, bn):
        gamma, beta, mean, var = bn
        y = jnp.einsum("bchw,oc->bohw", inp, w, precision=hp) + b[None, :, None, None]
        s = gamma / jnp.sqrt(var + _BN_EPS)
        return s[None, :, None, None] * (y - mean[None, :, None, None]) + beta[None, :, None, None]

    q = conv1x1_bn(x, params["wq"], params["bq"], params["bnq"])
    k = conv1x1_bn(x, params["wk"], params["bk"], params["bnk"])
    v = conv1x1_bn(x, params["wv"], params["bv"], params["bnv"])

    vl = jax.lax.conv_general_dilated(
        v, params["w_dw"], window_strides=(2, 2), padding=((1, 1), (1, 1)),
        dimension_numbers=("NCHW", "OIHW", "NCHW"), feature_group_count=dh,
        precision=hp) + params["b_dw"][None, :, None, None]
    gamma, beta, mean, var = params["bnl"]
    s = gamma / jnp.sqrt(var + _BN_EPS)
    vl = s[None, :, None, None] * (vl - mean[None, :, None, None]) + beta[None, :, None, None]

    qf = q.reshape(B, num_heads, -1, N).transpose(0, 1, 3, 2)
    kf = k.reshape(B, num_heads, -1, N)
    vf = v.reshape(B, num_heads, -1, N).transpose(0, 1, 3, 2)

    attn = jnp.einsum("bhnc,bhcm->bhnm", qf, kf, precision=hp) * scale
    attn = jax.nn.softmax(attn, axis=-1)
    xa = jnp.einsum("bhnm,bhmd->bhnd", attn, vf, precision=hp)
    xa = xa.transpose(0, 1, 3, 2).reshape(B, dh, res, res)
    out = jnp.maximum(xa + vl, 0.0)
    return conv1x1_bn(out, params["wp"], params["bp"], params["bnp"])


if __name__ == "__main__":
    # Shapes consistent with the module's own forward constraints:
    # H*W == resolution**2 and v_local broadcastable onto (res, res) forces a
    # tiny spatial grid (res=2, H=W=2 here); channel dims are kept small too.
    # B=4 exercises the batch-blocked path (bb=2, grid of 2 "parallel" steps).
    B = 4
    dim = 16
    key_dim = 4
    num_heads = 2
    attn_ratio = 2
    resolution = 2
    H = W = 2
    d = int(attn_ratio * key_dim)
    dh = d * num_heads
    nh_kd = num_heads * key_dim

    root = jax.random.PRNGKey(0)
    ks = list(jax.random.split(root, 16))

    def nrm(k, shape, s=0.1):
        return s * jax.random.normal(k, shape, dtype=jnp.float32)

    def bn(k, c):
        k1, k2, k3, k4 = jax.random.split(k, 4)
        return (1.0 + 0.1 * jax.random.normal(k1, (c,), jnp.float32),
                0.1 * jax.random.normal(k2, (c,), jnp.float32),
                0.1 * jax.random.normal(k3, (c,), jnp.float32),
                jax.random.uniform(k4, (c,), jnp.float32, 0.5, 1.5))

    params = {
        "wq": nrm(ks[0], (nh_kd, dim)), "bq": nrm(ks[1], (nh_kd,)), "bnq": bn(ks[2], nh_kd),
        "wk": nrm(ks[3], (nh_kd, dim)), "bk": nrm(ks[4], (nh_kd,)), "bnk": bn(ks[5], nh_kd),
        "wv": nrm(ks[6], (dh, dim)),    "bv": nrm(ks[7], (dh,)),    "bnv": bn(ks[8], dh),
        "w_dw": nrm(ks[9], (dh, 1, 3, 3)), "b_dw": nrm(ks[10], (dh,)), "bnl": bn(ks[11], dh),
        "wp": nrm(ks[12], (dim, dh)),   "bp": nrm(ks[13], (dim,)),  "bnp": bn(ks[14], dim),
    }
    x = jax.random.normal(ks[15], (B, dim, H, W), dtype=jnp.float32)

    out = attention4d_downsample(x, params, num_heads=num_heads, key_dim=key_dim,
                                 attn_ratio=attn_ratio, resolution=resolution)
    out = jax.block_until_ready(out)

    ref = _reference(x, params, num_heads=num_heads, key_dim=key_dim,
                     attn_ratio=attn_ratio, resolution=resolution)

    assert out.shape == (B, dim, resolution, resolution), out.shape
    max_err = float(jnp.max(jnp.abs(out - ref)))
    # bf16 MXU operands + approx-reciprocal softmax => bf16-level tolerance
    # against the f32 reference (accumulation and elementwise math stay f32).
    assert jnp.allclose(out, ref, atol=3e-2, rtol=3e-2), f"mismatch vs reference: {max_err}"

    print("KERNEL_OK")
</pallas_src>

<mosaic_0001>
module attributes {stable_mosaic.version = 11 : i64} {
  func.func @_attn_ds_kernel(%arg0: i32, %arg1: memref<2x4x16xbf16, #tpu.memory_space<vmem>>, %arg2: memref<16x32xbf16, #tpu.memory_space<vmem>>, %arg3: memref<1x32xf32, #tpu.memory_space<vmem>>, %arg4: memref<2x8xf32, #tpu.memory_space<vmem>>, %arg5: memref<2x16xf32, #tpu.memory_space<vmem>>, %arg6: memref<36x4xbf16, #tpu.memory_space<vmem>>, %arg7: memref<9x16xf32, #tpu.memory_space<vmem>>, %arg8: memref<1x16xf32, #tpu.memory_space<vmem>>, %arg9: memref<16x16xbf16, #tpu.memory_space<vmem>>, %arg10: memref<1x16xf32, #tpu.memory_space<vmem>>, %arg11: memref<2x4x16xf32, #tpu.memory_space<vmem>>) attributes {dimension_semantics = [#tpu.dimension_semantics<parallel>], iteration_bounds = array<i64: 2>, scalar_prefetch = 0 : i64, scratch_operands = 0 : i64, tpu.core_type = #tpu.core_type<tc>, window_params = [{transform_indices = @transform_0, window_bounds = array<i64: 2, 4, 16>}, {pipeline_mode = #tpu.pipeline_mode<synchronous>, transform_indices = @transform_1, window_bounds = array<i64: 16, 32>}, {pipeline_mode = #tpu.pipeline_mode<synchronous>, transform_indices = @transform_2, window_bounds = array<i64: 1, 32>}, {pipeline_mode = #tpu.pipeline_mode<synchronous>, transform_indices = @transform_3, window_bounds = array<i64: 2, 8>}, {pipeline_mode = #tpu.pipeline_mode<synchronous>, transform_indices = @transform_4, window_bounds = array<i64: 2, 16>}, {pipeline_mode = #tpu.pipeline_mode<synchronous>, transform_indices = @transform_5, window_bounds = array<i64: 36, 4>}, {pipeline_mode = #tpu.pipeline_mode<synchronous>, transform_indices = @transform_6, window_bounds = array<i64: 9, 16>}, {pipeline_mode = #tpu.pipeline_mode<synchronous>, transform_indices = @transform_7, window_bounds = array<i64: 1, 16>}, {pipeline_mode = #tpu.pipeline_mode<synchronous>, transform_indices = @transform_8, window_bounds = array<i64: 16, 16>}, {pipeline_mode = #tpu.pipeline_mode<synchronous>, transform_indices = @transform_9, window_bounds = array<i64: 1, 16>}, {transform_indices = @transform_10, window_bounds = array<i64: 2, 4, 16>}]} {
    %c0 = arith.constant 0 : index
    %c0_0 = arith.constant 0 : index
    %c0_1 = arith.constant 0 : index
    %0 = vector.load %arg1[%c0, %c0_0, %c0_1] : memref<2x4x16xbf16, #tpu.memory_space<vmem>>, vector<1x4x16xbf16>
    %1 = vector.shape_cast %0 : vector<1x4x16xbf16> to vector<4x16xbf16>
    %c1 = arith.constant 1 : index
    %c0_2 = arith.constant 0 : index
    %c0_3 = arith.constant 0 : index
    %2 = vector.load %arg1[%c1, %c0_2, %c0_3] : memref<2x4x16xbf16, #tpu.memory_space<vmem>>, vector<1x4x16xbf16>
    %3 = vector.shape_cast %2 : vector<1x4x16xbf16> to vector<4x16xbf16>
    %4 = tpu.concatenate %1, %3 in 0 : vector<4x16xbf16>, vector<4x16xbf16> -> vector<8x16xbf16>
    %c0_4 = arith.constant 0 : index
    %c0_5 = arith.constant 0 : index
    %5 = vector.load %arg2[%c0_4, %c0_5] : memref<16x32xbf16, #tpu.memory_space<vmem>>, vector<16x32xbf16>
    %cst = arith.constant dense<0.000000e+00> : vector<8x32xf32>
    %6 = tpu.matmul %4, %5, %cst {dimension_numbers = #tpu.dot_dimension_numbers<[1], [0], [0], [1], [0, 0, 1, 1], [], []>} : vector<8x16xbf16>, vector<16x32xbf16>, vector<8x32xf32> -> vector<8x32xf32>
    %c0_6 = arith.constant 0 : index
    %c0_7 = arith.constant 0 : index
    %7 = vector.load %arg3[%c0_6, %c0_7] : memref<1x32xf32, #tpu.memory_space<vmem>>, vector<1x32xf32>
    %8 = vector.broadcast %7 : vector<1x32xf32> to vector<8x32xf32>
    %9 = arith.addf %6, %8 : vector<8x32xf32>
    %10 = vector.extract_strided_slice %9 {offsets = [0, 0], sizes = [8, 8], strides = [1, 1]} : vector<8x32xf32> to vector<8x8xf32>
    %11 = vector.extract_strided_slice %9 {offsets = [0, 8], sizes = [8, 8], strides = [1, 1]} : vector<8x32xf32> to vector<8x8xf32>
    %12 = arith.truncf %11 : vector<8x8xf32> to vector<8x8xbf16>
    %13 = vector.extract_strided_slice %9 {offsets = [0, 16], sizes = [8, 16], strides = [1, 1]} : vector<8x32xf32> to vector<8x16xf32>
    %14 = arith.truncf %13 : vector<8x16xf32> to vector<8x16xbf16>
    %c0_8 = arith.constant 0 : index
    %c0_9 = arith.constant 0 : index
    %15 = vector.load %arg4[%c0_8, %c0_9] : memref<2x8xf32, #tpu.memory_space<vmem>>, vector<2x8xf32>
    %c0_10 = arith.constant 0 : index
    %c0_11 = arith.constant 0 : index
    %16 = vector.load %arg5[%c0_10, %c0_11] : memref<2x16xf32, #tpu.memory_space<vmem>>, vector<2x16xf32>
    %c0_12 = arith.constant 0 : index
    %c0_13 = arith.constant 0 : index
    %17 = vector.load %arg6[%c0_12, %c0_13] : memref<36x4xbf16, #tpu.memory_space<vmem>>, vector<36x4xbf16>
    %c0_14 = arith.constant 0 : index
    %c0_15 = arith.constant 0 : index
    %18 = vector.load %arg7[%c0_14, %c0_15] : memref<9x16xf32, #tpu.memory_space<vmem>>, vector<9x16xf32>
    %c0_16 = arith.constant 0 : index
    %c0_17 = arith.constant 0 : index
    %19 = vector.load %arg8[%c0_16, %c0_17] : memref<1x16xf32, #tpu.memory_space<vmem>>, vector<1x16xf32>
    %20 = vector.extract_strided_slice %10 {offsets = [0, 0], sizes = [4, 8], strides = [1, 1]} : vector<8x8xf32> to vector<4x8xf32>
    %21 = vector.extract_strided_slice %12 {offsets = [0, 0], sizes = [4, 8], strides = [1, 1]} : vector<8x8xbf16> to vector<4x8xbf16>
    %22 = vector.extract_strided_slice %14 {offsets = [0, 0], sizes = [4, 16], strides = [1, 1]} : vector<8x16xbf16> to vector<4x16xbf16>
    %23 = vector.extract_strided_slice %15 {offsets = [0, 0], sizes = [1, 8], strides = [1, 1]} : vector<2x8xf32> to vector<1x8xf32>
    %24 = vector.broadcast %23 : vector<1x8xf32> to vector<4x8xf32>
    %25 = arith.mulf %20, %24 : vector<4x8xf32>
    %26 = vector.extract_strided_slice %15 {offsets = [1, 0], sizes = [1, 8], strides = [1, 1]} : vector<2x8xf32> to vector<1x8xf32>
    %27 = vector.broadcast %26 : vector<1x8xf32> to vector<4x8xf32>
    %28 = arith.mulf %20, %27 : vector<4x8xf32>
    %29 = tpu.concatenate %25, %28 in 0 : vector<4x8xf32>, vector<4x8xf32> -> vector<8x8xf32>
    %30 = arith.truncf %29 : vector<8x8xf32> to vector<8x8xbf16>
    %cst_18 = arith.constant dense<0.000000e+00> : vector<8x4xf32>
    %31 = tpu.matmul %30, %21, %cst_18 {dimension_numbers = #tpu.dot_dimension_numbers<[1], [1], [0], [0], [0, 0, 1, 0], [], []>} : vector<8x8xbf16>, vector<4x8xbf16>, vector<8x4xf32> -> vector<8x4xf32>
    %cst_19 = arith.constant 5.000000e-01 : f32
    %32 = vector.broadcast %cst_19 : f32 to vector<8x4xf32>
    %33 = arith.mulf %31, %32 : vector<8x4xf32>
    %cst_20 = arith.constant dense<0xFF800000> : vector<8xf32>
    %34 = vector.multi_reduction <maximumf>, %33, %cst_20 [1] : vector<8x4xf32> to vector<8xf32>
    %35 = vector.shape_cast %34 : vector<8xf32> to vector<8x1xf32>
    %36 = vector.broadcast %35 : vector<8x1xf32> to vector<8x4xf32>
    %37 = arith.subf %33, %36 : vector<8x4xf32>
    %38 = math.exp %37 : vector<8x4xf32>
    %cst_21 = arith.constant dense<0.000000e+00> : vector<8xf32>
    %39 = vector.multi_reduction <add>, %38, %cst_21 [1] : vector<8x4xf32> to vector<8xf32>
    %40 = vector.shape_cast %39 : vector<8xf32> to vector<8x1xf32>
    %41 = tpu.reciprocal %40 {approx = true} : vector<8x1xf32> -> vector<8x1xf32>
    %42 = vector.broadcast %41 : vector<8x1xf32> to vector<8x4xf32>
    %43 = arith.mulf %38, %42 : vector<8x4xf32>
    %44 = arith.truncf %43 : vector<8x4xf32> to vector<8x4xbf16>
    %cst_22 = arith.constant dense<0.000000e+00> : vector<8x16xf32>
    %45 = tpu.matmul %44, %22, %cst_22 {dimension_numbers = #tpu.dot_dimension_numbers<[1], [0], [0], [1], [0, 0, 1, 1], [], []>} : vector<8x4xbf16>, vector<4x16xbf16>, vector<8x16xf32> -> vector<8x16xf32>
    %46 = vector.extract_strided_slice %45 {offsets = [0, 0], sizes = [4, 16], strides = [1, 1]} : vector<8x16xf32> to vector<4x16xf32>
    %47 = vector.extract_strided_slice %16 {offsets = [0, 0], sizes = [1, 16], strides = [1, 1]} : vector<2x16xf32> to vector<1x16xf32>
    %48 = vector.broadcast %47 : vector<1x16xf32> to vector<4x16xf32>
    %49 = arith.mulf %46, %48 : vector<4x16xf32>
    %50 = vector.extract_strided_slice %45 {offsets = [4, 0], sizes = [4, 16], strides = [1, 1]} : vector<8x16xf32> to vector<4x16xf32>
    %51 = vector.extract_strided_slice %16 {offsets = [1, 0], sizes = [1, 16], strides = [1, 1]} : vector<2x16xf32> to vector<1x16xf32>
    %52 = vector.broadcast %51 : vector<1x16xf32> to vector<4x16xf32>
    %53 = arith.mulf %50, %52 : vector<4x16xf32>
    %54 = arith.addf %49, %53 : vector<4x16xf32>
    %cst_23 = arith.constant dense<0.000000e+00> : vector<36x16xf32>
    %55 = tpu.matmul %17, %22, %cst_23 {dimension_numbers = #tpu.dot_dimension_numbers<[1], [0], [0], [1], [0, 0, 1, 1], [], []>} : vector<36x4xbf16>, vector<4x16xbf16>, vector<36x16xf32> -> vector<36x16xf32>
    %56 = vector.extract_strided_slice %55 {offsets = [0, 0], sizes = [4, 16], strides = [1, 1]} : vector<36x16xf32> to vector<4x16xf32>
    %57 = vector.extract_strided_slice %18 {offsets = [0, 0], sizes = [1, 16], strides = [1, 1]} : vector<9x16xf32> to vector<1x16xf32>
    %58 = vector.broadcast %57 : vector<1x16xf32> to vector<4x16xf32>
    %59 = arith.mulf %56, %58 : vector<4x16xf32>
    %60 = vector.extract_strided_slice %55 {offsets = [4, 0], sizes = [4, 16], strides = [1, 1]} : vector<36x16xf32> to vector<4x16xf32>
    %61 = vector.extract_strided_slice %18 {offsets = [1, 0], sizes = [1, 16], strides = [1, 1]} : vector<9x16xf32> to vector<1x16xf32>
    %62 = vector.broadcast %61 : vector<1x16xf32> to vector<4x16xf32>
    %63 = arith.mulf %60, %62 : vector<4x16xf32>
    %64 = arith.addf %59, %63 : vector<4x16xf32>
    %65 = vector.extract_strided_slice %55 {offsets = [8, 0], sizes = [4, 16], strides = [1, 1]} : vector<36x16xf32> to vector<4x16xf32>
    %66 = vector.extract_strided_slice %18 {offsets = [2, 0], sizes = [1, 16], strides = [1, 1]} : vector<9x16xf32> to vector<1x16xf32>
    %67 = vector.broadcast %66 : vector<1x16xf32> to vector<4x16xf32>
    %68 = arith.mulf %65, %67 : vector<4x16xf32>
    %69 = arith.addf %64, %68 : vector<4x16xf32>
    %70 = vector.extract_strided_slice %55 {offsets = [12, 0], sizes = [4, 16], strides = [1, 1]} : vector<36x16xf32> to vector<4x16xf32>
    %71 = vector.extract_strided_slice %18 {offsets = [3, 0], sizes = [1, 16], strides = [1, 1]} : vector<9x16xf32> to vector<1x16xf32>
    %72 = vector.broadcast %71 : vector<1x16xf32> to vector<4x16xf32>
    %73 = arith.mulf %70, %72 : vector<4x16xf32>
    %74 = arith.addf %69, %73 : vector<4x16xf32>
    %75 = vector.extract_strided_slice %55 {offsets = [16, 0], sizes = [4, 16], strides = [1, 1]} : vector<36x16xf32> to vector<4x16xf32>
    %76 = vector.extract_strided_slice %18 {offsets = [4, 0], sizes = [1, 16], strides = [1, 1]} : vector<9x16xf32> to vector<1x16xf32>
    %77 = vector.broadcast %76 : vector<1x16xf32> to vector<4x16xf32>
    %78 = arith.mulf %75, %77 : vector<4x16xf32>
    %79 = arith.addf %74, %78 : vector<4x16xf32>
    %80 = vector.extract_strided_slice %55 {offsets = [20, 0], sizes = [4, 16], strides = [1, 1]} : vector<36x16xf32> to vector<4x16xf32>
    %81 = vector.extract_strided_slice %18 {offsets = [5, 0], sizes = [1, 16], strides = [1, 1]} : vector<9x16xf32> to vector<1x16xf32>
    %82 = vector.broadcast %81 : vector<1x16xf32> to vector<4x16xf32>
    %83 = arith.mulf %80, %82 : vector<4x16xf32>
    %84 = arith.addf %79, %83 : vector<4x16xf32>
    %85 = vector.extract_strided_slice %55 {offsets = [24, 0], sizes = [4, 16], strides = [1, 1]} : vector<36x16xf32> to vector<4x16xf32>
    %86 = vector.extract_strided_slice %18 {offsets = [6, 0], sizes = [1, 16], strides = [1, 1]} : vector<9x16xf32> to vector<1x16xf32>
    %87 = vector.broadcast %86 : vector<1x16xf32> to vector<4x16xf32>
    %88 = arith.mulf %85, %87 : vector<4x16xf32>
    %89 = arith.addf %84, %88 : vector<4x16xf32>
    %90 = vector.extract_strided_slice %55 {offsets = [28, 0], sizes = [4, 16], strides = [1, 1]} : vector<36x16xf32> to vector<4x16xf32>
    %91 = vector.extract_strided_slice %18 {offsets = [7, 0], sizes = [1, 16], strides = [1, 1]} : vector<9x16xf32> to vector<1x16xf32>
    %92 = vector.broadcast %91 : vector<1x16xf32> to vector<4x16xf32>
    %93 = arith.mulf %90, %92 : vector<4x16xf32>
    %94 = arith.addf %89, %93 : vector<4x16xf32>
    %95 = vector.extract_strided_slice %55 {offsets = [32, 0], sizes = [4, 16], strides = [1, 1]} : vector<36x16xf32> to vector<4x16xf32>
    %96 = vector.extract_strided_slice %18 {offsets = [8, 0], sizes = [1, 16], strides = [1, 1]} : vector<9x16xf32> to vector<1x16xf32>
    %97 = vector.broadcast %96 : vector<1x16xf32> to vector<4x16xf32>
    %98 = arith.mulf %95, %97 : vector<4x16xf32>
    %99 = arith.addf %94, %98 : vector<4x16xf32>
    %100 = vector.broadcast %19 : vector<1x16xf32> to vector<4x16xf32>
    %101 = arith.addf %99, %100 : vector<4x16xf32>
    %102 = arith.addf %54, %101 : vector<4x16xf32>
    %cst_24 = arith.constant 0.000000e+00 : f32
    %103 = vector.broadcast %cst_24 : f32 to vector<4x16xf32>
    %104 = arith.maximumf %102, %103 : vector<4x16xf32>
    %105 = vector.extract_strided_slice %10 {offsets = [4, 0], sizes = [4, 8], strides = [1, 1]} : vector<8x8xf32> to vector<4x8xf32>
    %106 = vector.extract_strided_slice %12 {offsets = [4, 0], sizes = [4, 8], strides = [1, 1]} : vector<8x8xbf16> to vector<4x8xbf16>
    %107 = vector.extract_strided_slice %14 {offsets = [4, 0], sizes = [4, 16], strides = [1, 1]} : vector<8x16xbf16> to vector<4x16xbf16>
    %108 = vector.extract_strided_slice %15 {offsets = [0, 0], sizes = [1, 8], strides = [1, 1]} : vector<2x8xf32> to vector<1x8xf32>
    %109 = vector.broadcast %108 : vector<1x8xf32> to vector<4x8xf32>
    %110 = arith.mulf %105, %109 : vector<4x8xf32>
    %111 = vector.extract_strided_slice %15 {offsets = [1, 0], sizes = [1, 8], strides = [1, 1]} : vector<2x8xf32> to vector<1x8xf32>
    %112 = vector.broadcast %111 : vector<1x8xf32> to vector<4x8xf32>
    %113 = arith.mulf %105, %112 : vector<4x8xf32>
    %114 = tpu.concatenate %110, %113 in 0 : vector<4x8xf32>, vector<4x8xf32> -> vector<8x8xf32>
    %115 = arith.truncf %114 : vector<8x8xf32> to vector<8x8xbf16>
    %cst_25 = arith.constant dense<0.000000e+00> : vector<8x4xf32>
    %116 = tpu.matmul %115, %106, %cst_25 {dimension_numbers = #tpu.dot_dimension_numbers<[1], [1], [0], [0], [0, 0, 1, 0], [], []>} : vector<8x8xbf16>, vector<4x8xbf16>, vector<8x4xf32> -> vector<8x4xf32>
    %cst_26 = arith.constant 5.000000e-01 : f32
    %117 = vector.broadcast %cst_26 : f32 to vector<8x4xf32>
    %118 = arith.mulf %116, %117 : vector<8x4xf32>
    %cst_27 = arith.constant dense<0xFF800000> : vector<8xf32>
    %119 = vector.multi_reduction <maximumf>, %118, %cst_27 [1] : vector<8x4xf32> to vector<8xf32>
    %120 = vector.shape_cast %119 : vector<8xf32> to vector<8x1xf32>
    %121 = vector.broadcast %120 : vector<8x1xf32> to vector<8x4xf32>
    %122 = arith.subf %118, %121 : vector<8x4xf32>
    %123 = math.exp %122 : vector<8x4xf32>
    %cst_28 = arith.constant dense<0.000000e+00> : vector<8xf32>
    %124 = vector.multi_reduction <add>, %123, %cst_28 [1] : vector<8x4xf32> to vector<8xf32>
    %125 = vector.shape_cast %124 : vector<8xf32> to vector<8x1xf32>
    %126 = tpu.reciprocal %125 {approx = true} : vector<8x1xf32> -> vector<8x1xf32>
    %127 = vector.broadcast %126 : vector<8x1xf32> to vector<8x4xf32>
    %128 = arith.mulf %123, %127 : vector<8x4xf32>
    %129 = arith.truncf %128 : vector<8x4xf32> to vector<8x4xbf16>
    %cst_29 = arith.constant dense<0.000000e+00> : vector<8x16xf32>
    %130 = tpu.matmul %129, %107, %cst_29 {dimension_numbers = #tpu.dot_dimension_numbers<[1], [0], [0], [1], [0, 0, 1, 1], [], []>} : vector<8x4xbf16>, vector<4x16xbf16>, vector<8x16xf32> -> vector<8x16xf32>
    %131 = vector.extract_strided_slice %130 {offsets = [0, 0], sizes = [4, 16], strides = [1, 1]} : vector<8x16xf32> to vector<4x16xf32>
    %132 = vector.extract_strided_slice %16 {offsets = [0, 0], sizes = [1, 16], strides = [1, 1]} : vector<2x16xf32> to vector<1x16xf32>
    %133 = vector.broadcast %132 : vector<1x16xf32> to vector<4x16xf32>
    %134 = arith.mulf %131, %133 : vector<4x16xf32>
    %135 = vector.extract_strided_slice %130 {offsets = [4, 0], sizes = [4, 16], strides = [1, 1]} : vector<8x16xf32> to vector<4x16xf32>
    %136 = vector.extract_strided_slice %16 {offsets = [1, 0], sizes = [1, 16], strides = [1, 1]} : vector<2x16xf32> to vector<1x16xf32>
    %137 = vector.broadcast %136 : vector<1x16xf32> to vector<4x16xf32>
    %138 = arith.mulf %135, %137 : vector<4x16xf32>
    %139 = arith.addf %134, %138 : vector<4x16xf32>
    %cst_30 = arith.constant dense<0.000000e+00> : vector<36x16xf32>
    %140 = tpu.matmul %17, %107, %cst_30 {dimension_numbers = #tpu.dot_dimension_numbers<[1], [0], [0], [1], [0, 0, 1, 1], [], []>} : vector<36x4xbf16>, vector<4x16xbf16>, vector<36x16xf32> -> vector<36x16xf32>
    %141 = vector.extract_strided_slice %140 {offsets = [0, 0], sizes = [4, 16], strides = [1, 1]} : vector<36x16xf32> to vector<4x16xf32>
    %142 = vector.extract_strided_slice %18 {offsets = [0, 0], sizes = [1, 16], strides = [1, 1]} : vector<9x16xf32> to vector<1x16xf32>
    %143 = vector.broadcast %142 : vector<1x16xf32> to vector<4x16xf32>
    %144 = arith.mulf %141, %143 : vector<4x16xf32>
    %145 = vector.extract_strided_slice %140 {offsets = [4, 0], sizes = [4, 16], strides = [1, 1]} : vector<36x16xf32> to vector<4x16xf32>
    %146 = vector.extract_strided_slice %18 {offsets = [1, 0], sizes = [1, 16], strides = [1, 1]} : vector<9x16xf32> to vector<1x16xf32>
    %147 = vector.broadcast %146 : vector<1x16xf32> to vector<4x16xf32>
    %148 = arith.mulf %145, %147 : vector<4x16xf32>
    %149 = arith.addf %144, %148 : vector<4x16xf32>
    %150 = vector.extract_strided_slice %140 {offsets = [8, 0], sizes = [4, 16], strides = [1, 1]} : vector<36x16xf32> to vector<4x16xf32>
    %151 = vector.extract_strided_slice %18 {offsets = [2, 0], sizes = [1, 16], strides = [1, 1]} : vector<9x16xf32> to vector<1x16xf32>
    %152 = vector.broadcast %151 : vector<1x16xf32> to vector<4x16xf32>
    %153 = arith.mulf %150, %152 : vector<4x16xf32>
    %154 = arith.addf %149, %153 : vector<4x16xf32>
    %155 = vector.extract_strided_slice %140 {offsets = [12, 0], sizes = [4, 16], strides = [1, 1]} : vector<36x16xf32> to vector<4x16xf32>
    %156 = vector.extract_strided_slice %18 {offsets = [3, 0], sizes = [1, 16], strides = [1, 1]} : vector<9x16xf32> to vector<1x16xf32>
    %157 = vector.broadcast %156 : vector<1x16xf32> to vector<4x16xf32>
    %158 = arith.mulf %155, %157 : vector<4x16xf32>
    %159 = arith.addf %154, %158 : vector<4x16xf32>
    %160 = vector.extract_strided_slice %140 {offsets = [16, 0], sizes = [4, 16], strides = [1, 1]} : vector<36x16xf32> to vector<4x16xf32>
    %161 = vector.extract_strided_slice %18 {offsets = [4, 0], sizes = [1, 16], strides = [1, 1]} : vector<9x16xf32> to vector<1x16xf32>
    %162 = vector.broadcast %161 : vector<1x16xf32> to vector<4x16xf32>
    %163 = arith.mulf %160, %162 : vector<4x16xf32>
    %164 = arith.addf %159, %163 : vector<4x16xf32>
    %165 = vector.extract_strided_slice %140 {offsets = [20, 0], sizes = [4, 16], strides = [1, 1]} : vector<36x16xf32> to vector<4x16xf32>
    %166 = vector.extract_strided_slice %18 {offsets = [5, 0], sizes = [1, 16], strides = [1, 1]} : vector<9x16xf32> to vector<1x16xf32>
    %167 = vector.broadcast %166 : vector<1x16xf32> to vector<4x16xf32>
    %168 = arith.mulf %165, %167 : vector<4x16xf32>
    %169 = arith.addf %164, %168 : vector<4x16xf32>
    %170 = vector.extract_strided_slice %140 {offsets = [24, 0], sizes = [4, 16], strides = [1, 1]} : vector<36x16xf32> to vector<4x16xf32>
    %171 = vector.extract_strided_slice %18 {offsets = [6, 0], sizes = [1, 16], strides = [1, 1]} : vector<9x16xf32> to vector<1x16xf32>
    %172 = vector.broadcast %171 : vector<1x16xf32> to vector<4x16xf32>
    %173 = arith.mulf %170, %172 : vector<4x16xf32>
    %174 = arith.addf %169, %173 : vector<4x16xf32>
    %175 = vector.extract_strided_slice %140 {offsets = [28, 0], sizes = [4, 16], strides = [1, 1]} : vector<36x16xf32> to vector<4x16xf32>
    %176 = vector.extract_strided_slice %18 {offsets = [7, 0], sizes = [1, 16], strides = [1, 1]} : vector<9x16xf32> to vector<1x16xf32>
    %177 = vector.broadcast %176 : vector<1x16xf32> to vector<4x16xf32>
    %178 = arith.mulf %175, %177 : vector<4x16xf32>
    %179 = arith.addf %174, %178 : vector<4x16xf32>
    %180 = vector.extract_strided_slice %140 {offsets = [32, 0], sizes = [4, 16], strides = [1, 1]} : vector<36x16xf32> to vector<4x16xf32>
    %181 = vector.extract_strided_slice %18 {offsets = [8, 0], sizes = [1, 16], strides = [1, 1]} : vector<9x16xf32> to vector<1x16xf32>
    %182 = vector.broadcast %181 : vector<1x16xf32> to vector<4x16xf32>
    %183 = arith.mulf %180, %182 : vector<4x16xf32>
    %184 = arith.addf %179, %183 : vector<4x16xf32>
    %185 = vector.broadcast %19 : vector<1x16xf32> to vector<4x16xf32>
    %186 = arith.addf %184, %185 : vector<4x16xf32>
    %187 = arith.addf %139, %186 : vector<4x16xf32>
    %cst_31 = arith.constant 0.000000e+00 : f32
    %188 = vector.broadcast %cst_31 : f32 to vector<4x16xf32>
    %189 = arith.maximumf %187, %188 : vector<4x16xf32>
    %190 = tpu.concatenate %104, %189 in 0 : vector<4x16xf32>, vector<4x16xf32> -> vector<8x16xf32>
    %191 = arith.truncf %190 : vector<8x16xf32> to vector<8x16xbf16>
    %c0_32 = arith.constant 0 : index
    %c0_33 = arith.constant 0 : index
    %192 = vector.load %arg9[%c0_32, %c0_33] : memref<16x16xbf16, #tpu.memory_space<vmem>>, vector<16x16xbf16>
    %cst_34 = arith.constant dense<0.000000e+00> : vector<8x16xf32>
    %193 = tpu.matmul %191, %192, %cst_34 {dimension_numbers = #tpu.dot_dimension_numbers<[1], [0], [0], [1], [0, 0, 1, 1], [], []>} : vector<8x16xbf16>, vector<16x16xbf16>, vector<8x16xf32> -> vector<8x16xf32>
    %c0_35 = arith.constant 0 : index
    %c0_36 = arith.constant 0 : index
    %194 = vector.load %arg10[%c0_35, %c0_36] : memref<1x16xf32, #tpu.memory_space<vmem>>, vector<1x16xf32>
    %195 = vector.broadcast %194 : vector<1x16xf32> to vector<8x16xf32>
    %196 = arith.addf %193, %195 : vector<8x16xf32>
    %197 = vector.extract_strided_slice %196 {offsets = [0, 0], sizes = [4, 16], strides = [1, 1]} : vector<8x16xf32> to vector<4x16xf32>
    %c0_37 = arith.constant 0 : index
    %c0_38 = arith.constant 0 : index
    %c0_39 = arith.constant 0 : index
    %198 = vector.load %arg11[%c0_37, %c0_38, %c0_39] : memref<2x4x16xf32, #tpu.memory_space<vmem>>, vector<1x4x16xf32>
    %199 = vector.shape_cast %198 : vector<1x4x16xf32> to vector<4x16xf32>
    %200 = vector.shape_cast %197 : vector<4x16xf32> to vector<1x4x16xf32>
    tpu.vector_store %arg11[%c0_37, %c0_38, %c0_39], %200 {strides = array<i32>} : memref<2x4x16xf32, #tpu.memory_space<vmem>>, vector<1x4x16xf32>,
    %201 = vector.extract_strided_slice %196 {offsets = [4, 0], sizes = [4, 16], strides = [1, 1]} : vector<8x16xf32> to vector<4x16xf32>
    %c1_40 = arith.constant 1 : index
    %c0_41 = arith.constant 0 : index
    %c0_42 = arith.constant 0 : index
    %202 = vector.load %arg11[%c1_40, %c0_41, %c0_42] : memref<2x4x16xf32, #tpu.memory_space<vmem>>, vector<1x4x16xf32>
    %203 = vector.shape_cast %202 : vector<1x4x16xf32> to vector<4x16xf32>
    %204 = vector.shape_cast %201 : vector<4x16xf32> to vector<1x4x16xf32>
    tpu.vector_store %arg11[%c1_40, %c0_41, %c0_42], %204 {strides = array<i32>} : memref<2x4x16xf32, #tpu.memory_space<vmem>>, vector<1x4x16xf32>,
    return
  }
  func.func @transform_0(%arg0: i32) -> (i32, i32, i32) {
    %c0_i32 = arith.constant 0 : i32
    %c0_i32_0 = arith.constant 0 : i32
    %c0_i32_1 = arith.constant 0 : i32
    return %arg0, %c0_i32, %c0_i32_0 : i32, i32, i32
  }
  func.func @transform_1(%arg0: i32) -> (i32, i32) {
    %c0_i32 = arith.constant 0 : i32
    %c0_i32_0 = arith.constant 0 : i32
    %c0_i32_1 = arith.constant 0 : i32
    return %c0_i32, %c0_i32_0 : i32, i32
  }
  func.func @transform_2(%arg0: i32) -> (i32, i32) {
    %c0_i32 = arith.constant 0 : i32
    %c0_i32_0 = arith.constant 0 : i32
    %c0_i32_1 = arith.constant 0 : i32
    return %c0_i32, %c0_i32_0 : i32, i32
  }
  func.func @transform_3(%arg0: i32) -> (i32, i32) {
    %c0_i32 = arith.constant 0 : i32
    %c0_i32_0 = arith.constant 0 : i32
    %c0_i32_1 = arith.constant 0 : i32
    return %c0_i32, %c0_i32_0 : i32, i32
  }
  func.func @transform_4(%arg0: i32) -> (i32, i32) {
    %c0_i32 = arith.constant 0 : i32
    %c0_i32_0 = arith.constant 0 : i32
    %c0_i32_1 = arith.constant 0 : i32
    return %c0_i32, %c0_i32_0 : i32, i32
  }
  func.func @transform_5(%arg0: i32) -> (i32, i32) {
    %c0_i32 = arith.constant 0 : i32
    %c0_i32_0 = arith.constant 0 : i32
    %c0_i32_1 = arith.constant 0 : i32
    return %c0_i32, %c0_i32_0 : i32, i32
  }
  func.func @transform_6(%arg0: i32) -> (i32, i32) {
    %c0_i32 = arith.constant 0 : i32
    %c0_i32_0 = arith.constant 0 : i32
    %c0_i32_1 = arith.constant 0 : i32
    return %c0_i32, %c0_i32_0 : i32, i32
  }
  func.func @transform_7(%arg0: i32) -> (i32, i32) {
    %c0_i32 = arith.constant 0 : i32
    %c0_i32_0 = arith.constant 0 : i32
    %c0_i32_1 = arith.constant 0 : i32
    return %c0_i32, %c0_i32_0 : i32, i32
  }
  func.func @transform_8(%arg0: i32) -> (i32, i32) {
    %c0_i32 = arith.constant 0 : i32
    %c0_i32_0 = arith.constant 0 : i32
    %c0_i32_1 = arith.constant 0 : i32
    return %c0_i32, %c0_i32_0 : i32, i32
  }
  func.func @transform_9(%arg0: i32) -> (i32, i32) {
    %c0_i32 = arith.constant 0 : i32
    %c0_i32_0 = arith.constant 0 : i32
    %c0_i32_1 = arith.constant 0 : i32
    return %c0_i32, %c0_i32_0 : i32, i32
  }
  func.func @transform_10(%arg0: i32) -> (i32, i32, i32) {
    %c0_i32 = arith.constant 0 : i32
    %c0_i32_0 = arith.constant 0 : i32
    %c0_i32_1 = arith.constant 0 : i32
    return %arg0, %c0_i32, %c0_i32_0 : i32, i32, i32
  }
}

</mosaic_0001>

<llo_original>
// kernel: tpu_custom_call.1
$region0: #{tpu_custom_call.1}
  #allocation0 [shape = 'u32[]', space=smem, size = 0x4, offset = 0x4, fixed_abs, tag = 'smem constant byte address 0x4 - core index']
  #allocation1 [shape = 'u32[144,128]{1,0:T(1,128)}', space=vmem, size = 0x12000, scoped, tag = 'internal scratch']
  %s0 = inlined_call_operand.vmem [shape: bf16[4,4,16], index: 0, kind: input, shape index: {}]
  %s1 = inlined_call_operand.hbm [shape: bf16[16,32], index: 1, kind: input, shape index: {}]
  %s2 = inlined_call_operand.hbm [shape: f32[1,32], index: 2, kind: input, shape index: {}]
  %s3 = inlined_call_operand.hbm [shape: f32[2,8], index: 3, kind: input, shape index: {}]
  %s4 = inlined_call_operand.hbm [shape: f32[2,16], index: 4, kind: input, shape index: {}]
  %s5 = inlined_call_operand.vmem [shape: bf16[36,4], index: 5, kind: input, shape index: {}]
  %s6 = inlined_call_operand.vmem [shape: f32[9,16], index: 6, kind: input, shape index: {}]
  %s7 = inlined_call_operand.vmem [shape: f32[1,16], index: 7, kind: input, shape index: {}]
  %s8 = inlined_call_operand.vmem [shape: bf16[16,16], index: 8, kind: input, shape index: {}]
  %s9 = inlined_call_operand.vmem [shape: f32[1,16], index: 9, kind: input, shape index: {}]
  %s10 = inlined_call_operand.hbm [shape: f32[4,4,16], index: 10, kind: output, shape index: {}]
  %s11 = sld [smem:[#allocation0]]
  $region89: #{tpu_custom_call.1} parent=0
    _
  %s13 = ssub.s32 1, %s11
  %s14 = scalar_select 0, %s13, %s11
  $region1: #{tpu_custom_call.1} parent=0
    #allocation2 [shape = 'u8[4096]{0}', space=vmem, size = 0x1000, scoped, tag = 'input window, operand 1, single buffered']
    #allocation3 [shape = 's32[2]{0}', space=sflag, size = 0x8, scoped, tag = 'scoped memory for tpu_custom_call.1']
    #allocation4 [shape = 's32[2]{0}', space=sflag, size = 0x8, scoped, tag = 'scoped memory for tpu_custom_call.1']
    #allocation5 [shape = 'u8[512]{0}', space=vmem, size = 0x400, scoped, tag = 'input window, operand 2, single buffered']
    #allocation6 [shape = 's32[1]{0}', space=sflag, size = 0x4, scoped, tag = 'scoped memory for tpu_custom_call.1']
    #allocation7 [shape = 'u8[1024]{0}', space=vmem, size = 0x400, scoped, tag = 'input window, operand 3, single buffered']
    #allocation8 [shape = 'u8[1024]{0}', space=vmem, size = 0x400, scoped, tag = 'input window, operand 4, single buffered']
    #allocation9 [shape = 's32[1]{0}', space=sflag, size = 0x4, scoped, tag = 'scoped memory for tpu_custom_call.1']
    #allocation10 [shape = 'u8[8192]{0}', space=vmem, size = 0x2000, scoped, tag = 'output window, operand 0']
    %15 = vsyncpa [#allocation3], 0
    %16 = vsyncpa [#allocation6], 0
    %17 = vsyncpa [#allocation9], 0
    %18 = vsyncpa [#allocation4], 0
    %s19 = scalar_lea.sflag [#allocation4], 1
    %20 = vsyncpa %s19, 0
    loop: start=0, step=1, limit=4
    $region2: #{tpu_custom_call.1} parent=1 // loop_pre_header
      _
    $region3: #{tpu_custom_call.1} parent=1 // loop_header
      %s22 = sphi 0, %s26
      %p23 = scmp.ge.s32.totalorder %s22, 4
      %s32 = sphi 0, %s34
      %s35 = sphi 0, %s32
      %s36 = sphi 0, %s35
      %s52 = sphi 0, %s36
      %s56 = sphi 0, %s56
      %s58 = sphi 0, %s56
      %s59 = sphi 0, %s58
      %s73 = sphi 0, %s59
      %s77 = sphi 0, %s77
      %s79 = sphi 0, %s77
      %s80 = sphi 0, %s79
      %s94 = sphi 0, %s80
      %s98 = sphi 0, %s98
      %s100 = sphi 0, %s98
      %s101 = sphi 0, %s100
      %s115 = sphi 0, %s101
      %s119 = sphi 0, %s119
      %s121 = sphi 0, %s119
      %s122 = sphi 0, %s121
      %s136 = sphi 0, %s122
      %s140 = sphi 0, %s140
      %s142 = sphi 0, %s140
      %s143 = sphi 0, %s142
      %s157 = sphi 0, %s143
      %s161 = sphi 0, %s161
      %s163 = sphi 0, %s161
      %s164 = sphi 0, %s163
      %s178 = sphi 0, %s164
      %s182 = sphi 0, %s182
      %s184 = sphi 0, %s182
      %s185 = sphi 0, %s184
      %s199 = sphi 0, %s185
      %s203 = sphi 0, %s203
      %s205 = sphi 0, %s203
      %s206 = sphi 0, %s205
      %s220 = sphi 0, %s206
      %s224 = sphi 0, %s224
      %s226 = sphi 0, %s224
      %s227 = sphi 0, %s226
      %s241 = sphi 0, %s227
      %s247 = sphi 0, %s249
      %s250 = sphi 0, %s247
      %s251 = sphi 0, %s250
      %s267 = sphi 0, %s251
    $region4: #{tpu_custom_call.1} parent=1 // loop_header_branch
      %25 = sbr.rel (%p23) target = $region8
    $region5: #{tpu_custom_call.1} parent=1 // loop_body
      %s27 = ssub.s32 %s22, 1
      %s28 = ssub.s32 %s22, 2
      %s29 = sadd.s32 %s22, 1
      %s30 = ssub.s32 %s22, %s29
      %p31 = scmp.eq.s32.totalorder %s30, 0
      %s33 = sadd.s32 %s32, 1
      %s34 = scalar_select %p31, %s32, %s33
      %p37 = pneg %p31
      %p38 = scmp.eq.s32.totalorder %s22, 1
      %p39 = por %p37, %p38
      %p40 = scmp.ne.s32.totalorder %s32, %s35
      %p41 = scmp.eq.s32.totalorder %s22, 0
      %p42 = por %p40, %p41
      %p43 = scmp.ne.s32.totalorder %s32, %s35
      %p44 = scmp.eq.s32.totalorder %s27, 1
      %p45 = por %p43, %p44
      %p46 = scmp.ne.s32.totalorder %s35, %s36
      %p47 = scmp.eq.s32.totalorder %s27, 0
      %p48 = por %p46, %p47
      %p49 = scmp.ne.s32.totalorder %s35, %s36
      %p50 = scmp.eq.s32.totalorder %s28, 1
      %p51 = por %p49, %p50
      %p53 = scmp.ne.s32.totalorder %s36, %s52
      %p54 = scmp.eq.s32.totalorder %s28, 0
      %p55 = por %p53, %p54
      %s57 = sadd.s32 %s56, 1
      %p60 = scmp.eq.s32.totalorder %s22, 1
      %p61 = scmp.ne.s32.totalorder %s56, %s58
      %p62 = scmp.eq.s32.totalorder %s22, 0
      %p63 = por %p61, %p62
      %p64 = scmp.ne.s32.totalorder %s56, %s58
      %p65 = scmp.eq.s32.totalorder %s27, 1
      %p66 = por %p64, %p65
      %p67 = scmp.ne.s32.totalorder %s58, %s59
      %p68 = scmp.eq.s32.totalorder %s27, 0
      %p69 = por %p67, %p68
      %p70 = scmp.ne.s32.totalorder %s58, %s59
      %p71 = scmp.eq.s32.totalorder %s28, 1
      %p72 = por %p70, %p71
      %p74 = scmp.ne.s32.totalorder %s59, %s73
      %p75 = scmp.eq.s32.totalorder %s28, 0
      %p76 = por %p74, %p75
      %s78 = sadd.s32 %s77, 1
      %p81 = scmp.eq.s32.totalorder %s22, 1
      %p82 = scmp.ne.s32.totalorder %s77, %s79
      %p83 = scmp.eq.s32.totalorder %s22, 0
      %p84 = por %p82, %p83
      %p85 = scmp.ne.s32.totalorder %s77, %s79
      %p86 = scmp.eq.s32.totalorder %s27, 1
      %p87 = por %p85, %p86
      %p88 = scmp.ne.s32.totalorder %s79, %s80
      %p89 = scmp.eq.s32.totalorder %s27, 0
      %p90 = por %p88, %p89
      %p91 = scmp.ne.s32.totalorder %s79, %s80
      %p92 = scmp.eq.s32.totalorder %s28, 1
      %p93 = por %p91, %p92
      %p95 = scmp.ne.s32.totalorder %s80, %s94
      %p96 = scmp.eq.s32.totalorder %s28, 0
      %p97 = por %p95, %p96
      %s99 = sadd.s32 %s98, 1
      %p102 = scmp.eq.s32.totalorder %s22, 1
      %p103 = scmp.ne.s32.totalorder %s98, %s100
      %p104 = scmp.eq.s32.totalorder %s22, 0
      %p105 = por %p103, %p104
      %p106 = scmp.ne.s32.totalorder %s98, %s100
      %p107 = scmp.eq.s32.totalorder %s27, 1
      %p108 = por %p106, %p107
      %p109 = scmp.ne.s32.totalorder %s100, %s101
      %p110 = scmp.eq.s32.totalorder %s27, 0
      %p111 = por %p109, %p110
      %p112 = scmp.ne.s32.totalorder %s100, %s101
      %p113 = scmp.eq.s32.totalorder %s28, 1
      %p114 = por %p112, %p113
      %p116 = scmp.ne.s32.totalorder %s101, %s115
      %p117 = scmp.eq.s32.totalorder %s28, 0
      %p118 = por %p116, %p117
      %s120 = sadd.s32 %s119, 1
      %p123 = scmp.eq.s32.totalorder %s22, 1
      %p124 = scmp.ne.s32.totalorder %s119, %s121
      %p125 = scmp.eq.s32.totalorder %s22, 0
      %p126 = por %p124, %p125
      %p127 = scmp.ne.s32.totalorder %s119, %s121
      %p128 = scmp.eq.s32.totalorder %s27, 1
      %p129 = por %p127, %p128
      %p130 = scmp.ne.s32.totalorder %s121, %s122
      %p131 = scmp.eq.s32.totalorder %s27, 0
      %p132 = por %p130, %p131
      %p133 = scmp.ne.s32.totalorder %s121, %s122
      %p134 = scmp.eq.s32.totalorder %s28, 1
      %p135 = por %p133, %p134
      %p137 = scmp.ne.s32.totalorder %s122, %s136
      %p138 = scmp.eq.s32.totalorder %s28, 0
      %p139 = por %p137, %p138
      %s141 = sadd.s32 %s140, 1
      %p144 = scmp.eq.s32.totalorder %s22, 1
      %p145 = scmp.ne.s32.totalorder %s140, %s142
      %p146 = scmp.eq.s32.totalorder %s22, 0
      %p147 = por %p145, %p146
      %p148 = scmp.ne.s32.totalorder %s140, %s142
      %p149 = scmp.eq.s32.totalorder %s27, 1
      %p150 = por %p148, %p149
      %p151 = scmp.ne.s32.totalorder %s142, %s143
      %p152 = scmp.eq.s32.totalorder %s27, 0
      %p153 = por %p151, %p152
      %p154 = scmp.ne.s32.totalorder %s142, %s143
      %p155 = scmp.eq.s32.totalorder %s28, 1
      %p156 = por %p154, %p155
      %p158 = scmp.ne.s32.totalorder %s143, %s157
      %p159 = scmp.eq.s32.totalorder %s28, 0
      %p160 = por %p158, %p159
      %s162 = sadd.s32 %s161, 1
      %p165 = scmp.eq.s32.totalorder %s22, 1
      %p166 = scmp.ne.s32.totalorder %s161, %s163
      %p167 = scmp.eq.s32.totalorder %s22, 0
      %p168 = por %p166, %p167
      %p169 = scmp.ne.s32.totalorder %s161, %s163
      %p170 = scmp.eq.s32.totalorder %s27, 1
      %p171 = por %p169, %p170
      %p172 = scmp.ne.s32.totalorder %s163, %s164
      %p173 = scmp.eq.s32.totalorder %s27, 0
      %p174 = por %p172, %p173
      %p175 = scmp.ne.s32.totalorder %s163, %s164
      %p176 = scmp.eq.s32.totalorder %s28, 1
      %p177 = por %p175, %p176
      %p179 = scmp.ne.s32.totalorder %s164, %s178
      %p180 = scmp.eq.s32.totalorder %s28, 0
      %p181 = por %p179, %p180
      %s183 = sadd.s32 %s182, 1
      %p186 = scmp.eq.s32.totalorder %s22, 1
      %p187 = scmp.ne.s32.totalorder %s182, %s184
      %p188 = scmp.eq.s32.totalorder %s22, 0
      %p189 = por %p187, %p188
      %p190 = scmp.ne.s32.totalorder %s182, %s184
      %p191 = scmp.eq.s32.totalorder %s27, 1
      %p192 = por %p190, %p191
      %p193 = scmp.ne.s32.totalorder %s184, %s185
      %p194 = scmp.eq.s32.totalorder %s27, 0
      %p195 = por %p193, %p194
      %p196 = scmp.ne.s32.totalorder %s184, %s185
      %p197 = scmp.eq.s32.totalorder %s28, 1
      %p198 = por %p196, %p197
      %p200 = scmp.ne.s32.totalorder %s185, %s199
      %p201 = scmp.eq.s32.totalorder %s28, 0
      %p202 = por %p200, %p201
      %s204 = sadd.s32 %s203, 1
      %p207 = scmp.eq.s32.totalorder %s22, 1
      %p208 = scmp.ne.s32.totalorder %s203, %s205
      %p209 = scmp.eq.s32.totalorder %s22, 0
      %p210 = por %p208, %p209
      %p211 = scmp.ne.s32.totalorder %s203, %s205
      %p212 = scmp.eq.s32.totalorder %s27, 1
      %p213 = por %p211, %p212
      %p214 = scmp.ne.s32.totalorder %s205, %s206
      %p215 = scmp.eq.s32.totalorder %s27, 0
      %p216 = por %p214, %p215
      %p217 = scmp.ne.s32.totalorder %s205, %s206
      %p218 = scmp.eq.s32.totalorder %s28, 1
      %p219 = por %p217, %p218
      %p221 = scmp.ne.s32.totalorder %s206, %s220
      %p222 = scmp.eq.s32.totalorder %s28, 0
      %p223 = por %p221, %p222
      %s225 = sadd.s32 %s224, 1
      %p228 = scmp.eq.s32.totalorder %s22, 1
      %p229 = scmp.ne.s32.totalorder %s224, %s226
      %p230 = scmp.eq.s32.totalorder %s22, 0
      %p231 = por %p229, %p230
      %p232 = scmp.ne.s32.totalorder %s224, %s226
      %p233 = scmp.eq.s32.totalorder %s27, 1
      %p234 = por %p232, %p233
      %p235 = scmp.ne.s32.totalorder %s226, %s227
      %p236 = scmp.eq.s32.totalorder %s27, 0
      %p237 = por %p235, %p236
      %p238 = scmp.ne.s32.totalorder %s226, %s227
      %p239 = scmp.eq.s32.totalorder %s28, 1
      %p240 = por %p238, %p239
      %p242 = scmp.ne.s32.totalorder %s227, %s241
      %p243 = scmp.eq.s32.totalorder %s28, 0
      %p244 = por %p242, %p243
      %s245 = ssub.s32 %s22, %s29
      %p246 = scmp.eq.s32.totalorder %s245, 0
      %s248 = sadd.s32 %s247, 1
      %s249 = scalar_select %p246, %s247, %s248
      %p252 = pneg %p246
      %p253 = scmp.eq.s32.totalorder %s22, 1
      %p254 = por %p252, %p253
      %p255 = scmp.ne.s32.totalorder %s247, %s250
      %p256 = scmp.eq.s32.totalorder %s22, 0
      %p257 = por %p255, %p256
      %p258 = scmp.ne.s32.totalorder %s247, %s250
      %p259 = scmp.eq.s32.totalorder %s27, 1
      %p260 = por %p258, %p259
      %p261 = scmp.ne.s32.totalorder %s250, %s251
      %p262 = scmp.eq.s32.totalorder %s27, 0
      %p263 = por %p261, %p262
      %p264 = scmp.ne.s32.totalorder %s250, %s251
      %p265 = scmp.eq.s32.totalorder %s28, 1
      %p266 = por %p264, %p265
      %p268 = scmp.ne.s32.totalorder %s251, %s267
      %p269 = scmp.eq.s32.totalorder %s28, 0
      %p270 = por %p268, %p269
      %p271 = scmp.le.s32.totalorder 1, %s22
      %p272 = scmp.lt.s32.totalorder %s22, 3
      %p273 = pnand %p271, %p272
      %p274 = pneg %p273
      // Predicated region
      $region9: #{tpu_custom_call.1} parent=5 // pred_check
        _
      $region10: #{tpu_custom_call.1} parent=5 // pred_check_branch
        %276 = sbr.rel (%p273) target = $region12
      $region11: #{tpu_custom_call.1} parent=5 // pred_region
        %s277 = ssub.s32 %s22, 1
        // Predicated region
        $region13: #{tpu_custom_call.1} parent=11 // pred_check
          %p278 = pneg %p69
        $region14: #{tpu_custom_call.1} parent=11 // pred_check_branch
          %280 = sbr.rel (%p278) target = $region16
        $region15: #{tpu_custom_call.1} parent=11 // pred_region
          %s282 = ssub.s32 128, 128
          %283 = vsyncadd [#allocation3], %s282
          %s284 = sshll.u32 [#allocation2], 4
          %s285 = int_to_ptr.vmem [resolvable:$true] %s284
          %290 = dma.hbm_to_vmem [thread:$0]  %s1, 128, %s285, [#allocation3], 64, 64, 4
        $region16: #{tpu_custom_call.1} parent=11 // pred_fallthru
          _
        // Predicated region
        $region17: #{tpu_custom_call.1} parent=11 // pred_check
          %p291 = pneg %p90
        $region18: #{tpu_custom_call.1} parent=11 // pred_check_branch
          %293 = sbr.rel (%p291) target = $region20
        $region19: #{tpu_custom_call.1} parent=11 // pred_region
          %s295 = ssub.s32 16, 16
          %296 = vsyncadd [#allocation6], %s295
          %s298 = sshll.u32 [#allocation5], 4
          %s299 = int_to_ptr.vmem [resolvable:$true] %s298
          %301 = dma.hbm_to_vmem [thread:$0]  %s2, 16, %s299, [#allocation6]
        $region20: #{tpu_custom_call.1} parent=11 // pred_fallthru
          _
        // Predicated region
        $region21: #{tpu_custom_call.1} parent=11 // pred_check
          %p302 = pneg %p111
        $region22: #{tpu_custom_call.1} parent=11 // pred_check_branch
          %304 = sbr.rel (%p302) target = $region24
        $region23: #{tpu_custom_call.1} parent=11 // pred_region
          %s306 = ssub.s32 32, 32
          %307 = vsyncadd [#allocation6], %s306
          %s309 = sshll.u32 [#allocation7], 4
          %s310 = int_to_ptr.vmem [resolvable:$true] %s309
          %312 = dma.hbm_to_vmem [thread:$0]  %s3, 32, %s310, [#allocation6]
        $region24: #{tpu_custom_call.1} parent=11 // pred_fallthru
          _
        // Predicated region
        $region25: #{tpu_custom_call.1} parent=11 // pred_check
          %p313 = pneg %p132
        $region26: #{tpu_custom_call.1} parent=11 // pred_check_branch
          %315 = sbr.rel (%p313) target = $region28
        $region27: #{tpu_custom_call.1} parent=11 // pred_region
          %s317 = ssub.s32 32, 32
          %318 = vsyncadd [#allocation9], %s317
          %s320 = sshll.u32 [#allocation8], 4
          %s321 = int_to_ptr.vmem [resolvable:$true] %s320
          %323 = dma.hbm_to_vmem [thread:$0]  %s4, 32, %s321, [#allocation9]
        $region28: #{tpu_custom_call.1} parent=11 // pred_fallthru
          _
        // Predicated region
        $region29: #{tpu_custom_call.1} parent=11 // pred_check
          %p324 = pneg %p153
        $region30: #{tpu_custom_call.1} parent=11 // pred_check_branch
          %326 = sbr.rel (%p324) target = $region32
        $region31: #{tpu_custom_call.1} parent=11 // pred_region
          _
        $region32: #{tpu_custom_call.1} parent=11 // pred_fallthru
          _
        // Predicated region
        $region33: #{tpu_custom_call.1} parent=11 // pred_check
          %p327 = pneg %p174
        $region34: #{tpu_custom_call.1} parent=11 // pred_check_branch
          %329 = sbr.rel (%p327) target = $region36
        $region35: #{tpu_custom_call.1} parent=11 // pred_region
          _
        $region36: #{tpu_custom_call.1} parent=11 // pred_fallthru
          _
        // Predicated region
        $region37: #{tpu_custom_call.1} parent=11 // pred_check
          %p330 = pneg %p195
        $region38: #{tpu_custom_call.1} parent=11 // pred_check_branch
          %332 = sbr.rel (%p330) target = $region40
        $region39: #{tpu_custom_call.1} parent=11 // pred_region
          _
        $region40: #{tpu_custom_call.1} parent=11 // pred_fallthru
          _
        // Predicated region
        $region41: #{tpu_custom_call.1} parent=11 // pred_check
          %p333 = pneg %p216
        $region42: #{tpu_custom_call.1} parent=11 // pred_check_branch
          %335 = sbr.rel (%p333) target = $region44
        $region43: #{tpu_custom_call.1} parent=11 // pred_region
          _
        $region44: #{tpu_custom_call.1} parent=11 // pred_fallthru
          _
        // Predicated region
        $region45: #{tpu_custom_call.1} parent=11 // pred_check
          %p336 = pneg %p237
        $region46: #{tpu_custom_call.1} parent=11 // pred_check_branch
          %338 = sbr.rel (%p336) target = $region48
        $region47: #{tpu_custom_call.1} parent=11 // pred_region
          _
        $region48: #{tpu_custom_call.1} parent=11 // pred_fallthru
          _
      $region12: #{tpu_custom_call.1} parent=5 // pred_fallthru
        _
      %p339 = scmp.lt.s32.totalorder %s22, 2
      // Predicated region
      $region49: #{tpu_custom_call.1} parent=5 // pred_check
        %p340 = pneg %p339
      $region50: #{tpu_custom_call.1} parent=5 // pred_check_branch
        %342 = sbr.rel (%p340) target = $region52
      $region51: #{tpu_custom_call.1} parent=5 // pred_region
        // Predicated region
        $region53: #{tpu_custom_call.1} parent=51 // pred_check
          %p343 = pneg %p42
        $region54: #{tpu_custom_call.1} parent=51 // pred_check_branch
          %345 = sbr.rel (%p343) target = $region56
        $region55: #{tpu_custom_call.1} parent=51 // pred_region
          %s346 = smul.u32 2, %s22
          %p347 = scmp.lt.s32.totalorder %s346, 3
          %s348 = scalar_select %p347, %s346, 3
          %s349 = smul.addr %s348, 2
          %s350 = scalar_lea.vmem %s0, %s349
          %s351 = smul.u32 2, %s22
        $region56: #{tpu_custom_call.1} parent=51 // pred_fallthru
          _
      $region52: #{tpu_custom_call.1} parent=5 // pred_fallthru
        _
      %p352 = scmp.le.s32.totalorder 1, %s22
      %p353 = scmp.lt.s32.totalorder %s22, 3
      %p354 = pnand %p352, %p353
      %p355 = pneg %p354
      // Predicated region
      $region57: #{tpu_custom_call.1} parent=5 // pred_check
        _
      $region58: #{tpu_custom_call.1} parent=5 // pred_check_branch
        %357 = sbr.rel (%p354) target = $region60
      $region59: #{tpu_custom_call.1} parent=5 // pred_region
        %s358 = ssub.s32 %s22, 1
        // Predicated region
        $region61: #{tpu_custom_call.1} parent=59 // pred_check
          %p359 = pneg %p69
        $region62: #{tpu_custom_call.1} parent=59 // pred_check_branch
          %361 = sbr.rel (%p359) target = $region64
        $region63: #{tpu_custom_call.1} parent=59 // pred_region
          %362 = dma.done [#allocation3], 128
        $region64: #{tpu_custom_call.1} parent=59 // pred_fallthru
          _
        // Predicated region
        $region65: #{tpu_custom_call.1} parent=59 // pred_check
          %p363 = pneg %p90
        $region66: #{tpu_custom_call.1} parent=59 // pred_check_branch
          %365 = sbr.rel (%p363) target = $region68
        $region67: #{tpu_custom_call.1} parent=59 // pred_region
          %366 = dma.done [#allocation6], 16
        $region68: #{tpu_custom_call.1} parent=59 // pred_fallthru
          _
        // Predicated region
        $region69: #{tpu_custom_call.1} parent=59 // pred_check
          %p367 = pneg %p111
        $region70: #{tpu_custom_call.1} parent=59 // pred_check_branch
          %369 = sbr.rel (%p367) target = $region72
        $region71: #{tpu_custom_call.1} parent=59 // pred_region
          %370 = dma.done [#allocation6], 32
        $region72: #{tpu_custom_call.1} parent=59 // pred_fallthru
          _
        // Predicated region
        $region73: #{tpu_custom_call.1} parent=59 // pred_check
          %p371 = pneg %p132
        $region74: #{tpu_custom_call.1} parent=59 // pred_check_branch
          %373 = sbr.rel (%p371) target = $region76
        $region75: #{tpu_custom_call.1} parent=59 // pred_region
          %374 = dma.done [#allocation9], 32
        $region76: #{tpu_custom_call.1} parent=59 // pred_fallthru
          _
        %s375 = smul.u32 2, %s27
        %p376 = scmp.lt.s32.totalorder %s375, 3
        %s377 = scalar_select %p376, %s375, 3
        %s378 = smul.addr %s377, 2
        %s379 = scalar_lea.vmem %s0, %s378
        %p380 = pneg %p48
        %p381 = pneg %p45
        %p382 = pneg %p69
        %p383 = pneg %p66
        %p384 = pneg %p90
        %p385 = pneg %p87
        %p386 = pneg %p111
        %p387 = pneg %p108
        %p388 = pneg %p132
        %p389 = pneg %p129
        %p390 = pneg %p153
        %p391 = pneg %p150
        %p392 = pneg %p174
        %p393 = pneg %p171
        %p394 = pneg %p195
        %p395 = pneg %p192
        %p396 = pneg %p216
        %p397 = pneg %p213
        %p398 = pneg %p237
        %p399 = pneg %p234
        %p400 = pneg %p263
        %p401 = pneg %p260
        %s402 = sand.u32 %s250, 1
        %s403 = scalar_lea.sflag [#allocation4], %s402
        %s404 = sand.u32 %s250, 1
        %s405 = smul.addr %s404, 8
        %s406 = scalar_lea.vmem [#allocation10], %s405
        %s407 = smul.u32 2, %s27
        %p408 = scmp.lt.s32.totalorder %s407, 3
        %s409 = scalar_select %p408, %s407, 3
        %s410 = smul.addr %s409, 2
        %s411 = scalar_lea.vmem %s0, %s410
        %s412 = smul.u32 2, %s27
        %s413 = smul.u32 2, %s27
        %v415 = vld [vmem:[%s411] sm:$0x3]
        %s416 = scalar_lea.vmem %s411, 2
        %v417 = vld [vmem:[%s416] sm:$0x3]
        %v419 = vcombine.low %v417, %v417
        %v421 = vunpack.c.l.s4 1983009808
        %v422 = vunpack.c.0.s8 %v421
        %v423 = vlaneseq
        %v424 = vshrl.u32 %v423, 7
        %v425 = vsub.s32 %v422, %v424
        %v426 = vrot.slane %v419, %v425
        %vm427 = vcmask 1041408
        %v430 = vsel %vm427, %v415, %v426
        %v431 = vld [vmem:[#allocation2] sm:$0xf]
        %v432 = vld [vmem:[#allocation2 + $0x4] sm:$0xf]
        %v433 = vld [vmem:[#allocation5] sm:$0x1]
        %v435 = vlaneseq
        %v436 = vshrl.u32 %v435, 7
        %v437 = vsub.s32 0, %v436
        %v438 = vrot.slane %v433, %v437
        %v442 = vunpack.c.l.b16 %v431
        %v443 = vunpack.c.l.b16 %v432
        %v444 = vpack.c.b16 %v443, %v442
        %vm446 = vcmask 130048
        %v447 = vsel %vm446, %v430, 0
        %449 = vmatprep.subr.bf16.mxu0 0
        %450 = vmatpush1.bf16.msra.mxu0 0
        %451 = vmatprep.subr.bf16.mxu0 0
        %452 = vmatpush1.bf16.msra.mxu0 0
        %453 = vmatprep.subr.bf16.mxu0 0
        %454 = vmatpush1.bf16.msra.mxu0 0
        %455 = vmatprep.subr.bf16.mxu0 0
        %456 = vmatpush1.bf16.msra.mxu0 0
        %457 = vmatprep.subr.bf16.mxu0 0
        %458 = vmatpush1.bf16.msra.mxu0 0
        %459 = vmatprep.subr.bf16.mxu0 0
        %460 = vmatpush1.bf16.msra.mxu0 0
        %461 = vmatprep.subr.bf16.mxu0 0
        %462 = vmatpush1.bf16.msra.mxu0 0
        %463 = vmatprep.subr.bf16.mxu0 0
        %464 = vmatpush1.bf16.msra.mxu0 %v444
        %465 = vmatprep.subr.bf16.mxu0 0
        %466 = vmatpush2.bf16.msra.mxu0 0
        %467 = vmatprep.subr.bf16.mxu0 0
        %468 = vmatpush2.bf16.msra.mxu0 0
        %469 = vmatprep.subr.bf16.mxu0 0
        %470 = vmatpush2.bf16.msra.mxu0 0
        %471 = vmatprep.subr.bf16.mxu0 0
        %472 = vmatpush2.bf16.msra.mxu0 0
        %473 = vmatprep.subr.bf16.mxu0 0
        %474 = vmatpush2.bf16.msra.mxu0 0
        %475 = vmatprep.subr.bf16.mxu0 0
        %476 = vmatpush2.bf16.msra.mxu0 0
        %477 = vmatprep.subr.bf16.mxu0 0
        %478 = vmatpush2.bf16.msra.mxu0 0
        %479 = vmatprep.subr.bf16.mxu0 0
        %480 = vmatpush2.bf16.msra.mxu0 0
        %481 = vmatprep.mubr.bf16.mxu0 0
        %482 = vmatmul.mubr.bf16.gmra.mxu0 %v447
        %v483 = vpop.f32.mrf.mxu0
        %v484 = vadd.f32 %v438, %v483
        %v485 = vpop.f32.mrf.mxu0
        %v486 = vpop.f32.mrf.mxu0
        %v487 = vpop.f32.mrf.mxu0
        %488 = vdwg.mxu0
        %v489 = vpack.c.bf16 %v484, %v484
        %v490 = vld [vmem:[#allocation7] sm:$0x3]
        %v491 = vld [vmem:[#allocation8] sm:$0x3]
        %v492 = vld [vmem:[%s5] sm:$0xf]
        %v493 = vld [vmem:[%s5 + $0x4] sm:$0xf]
        %v494 = vld [vmem:[%s5 + $0x8] sm:$0xf]
        %v495 = vld [vmem:[%s5 + $0xc] sm:$0xf]
        %v496 = vld [vmem:[%s5 + $0x10] sm:$0x3]
        %v497 = vld [vmem:[%s6] sm:$0xff]
        %v498 = vld [vmem:[%s6 + $0x8] sm:$0x1]
        %v499 = vld [vmem:[%s7] sm:$0x1]
        %v500 = vlaneseq
        %v501 = vshrl.u32 %v500, 7
        %v502 = vsub.s32 0, %v501
        %v503 = vrot.slane %v490, %v502
        %v504 = vmul.f32 %v484, %v503
        %v505 = vlaneseq
        %v506 = vshrl.u32 %v505, 7
        %v507 = vsub.s32 1, %v506
        %v508 = vrot.slane %v490, %v507
        %v509 = vmul.f32 %v484, %v508
        %v511 = vrot.slane %v509, 4
        %vm513 = vcmask 1043456
        %v514 = vsel %vm513, %v504, %v511
        %v515 = vpack.c.bf16 %v514, %v514
        %517 = vrot.lane.b32.xlu0 %v489, 120
        %v518 = vpop.permute.xlu0 %517
        %vm519 = vcmask 64512
        %v521 = vsel %vm519, %v515, 0
        %v524 = vsel %vm519, %v518, 0
        %526 = vmatprep.subr.bf16.mxu0 0
        %527 = vmatpush1.bf16.xpose.msra.mxu0 0
        %528 = vmatprep.subr.bf16.mxu0 0
        %529 = vmatpush1.bf16.xpose.msra.mxu0 0
        %530 = vmatprep.subr.bf16.mxu0 0
        %531 = vmatpush1.bf16.xpose.msra.mxu0 0
        %532 = vmatprep.subr.bf16.mxu0 0
        %533 = vmatpush1.bf16.xpose.msra.mxu0 0
        %534 = vmatprep.subr.bf16.mxu0 0
        %535 = vmatpush1.bf16.xpose.msra.mxu0 0
        %536 = vmatprep.subr.bf16.mxu0 0
        %537 = vmatpush1.bf16.xpose.msra.mxu0 0
        %538 = vmatprep.subr.bf16.mxu0 0
        %539 = vmatpush1.bf16.xpose.msra.mxu0 0
        %540 = vmatprep.subr.bf16.mxu0 0
        %541 = vmatpush1.bf16.xpose.msra.mxu0 %v524
        %542 = vmatprep.subr.bf16.mxu0 0
        %543 = vmatpush2.bf16.xpose.msra.mxu0 0
        %544 = vmatprep.subr.bf16.mxu0 0
        %545 = vmatpush2.bf16.xpose.msra.mxu0 0
        %546 = vmatprep.subr.bf16.mxu0 0
        %547 = vmatpush2.bf16.xpose.msra.mxu0 0
        %548 = vmatprep.subr.bf16.mxu0 0
        %549 = vmatpush2.bf16.xpose.msra.mxu0 0
        %550 = vmatprep.subr.bf16.mxu0 0
        %551 = vmatpush2.bf16.xpose.msra.mxu0 0
        %552 = vmatprep.subr.bf16.mxu0 0
        %553 = vmatpush2.bf16.xpose.msra.mxu0 0
        %554 = vmatprep.subr.bf16.mxu0 0
        %555 = vmatpush2.bf16.xpose.msra.mxu0 0
        %556 = vmatprep.subr.bf16.mxu0 0
        %557 = vmatpush2.bf16.xpose.msra.mxu0 0
        %558 = vmatprep.mubr.bf16.mxu0 0
        %559 = vmatmul.mubr.bf16.gmra.mxu0 %v521
        %v560 = vpop.f32.mrf.mxu0
        %v561 = vadd.f32 0.0, %v560
        %v562 = vpop.f32.mrf.mxu0
        %v563 = vpop.f32.mrf.mxu0
        %v564 = vpop.f32.mrf.mxu0
        %565 = vdwg.mxu0
        %v566 = vmul.f32 %v561, 0.5
        %vm567 = vcmask 31744
        %v568 = vsel %vm567, %v566, -inf
        %569 = vmax.xlane.f32.xlu0 %v568
        %v570 = vpop.xlane.xlu0 %569
        %v571 = vsub.f32 %v566, %v570
        %v572 = vmul.f32 %v571, 1.442695
        %v573 = vpow.pop %v572
        %v574 = vsel %vm567, %v573, 0.0
        %575 = vadd.xlane.f32.xlu0 %v574
        %v576 = vpop.xlane.xlu0 %575
        %v577 = vrcp.pop %v576
        %v578 = vmul.f32 %v573, %v577
        %v579 = vpack.c.bf16 %v578, %v578
        %580 = vrot.lane.b32.xlu0 %v489, 112
        %v581 = vpop.permute.xlu0 %580
        %v583 = vsel %vm567, %v579, 0
        %v586 = vsel %vm427, %v581, 0
        %588 = vmatprep.subr.bf16.mxu0 0
        %589 = vmatpush1.bf16.msra.mxu0 0
        %590 = vmatprep.subr.bf16.mxu0 0
        %591 = vmatpush1.bf16.msra.mxu0 0
        %592 = vmatprep.subr.bf16.mxu0 0
        %593 = vmatpush1.bf16.msra.mxu0 0
        %594 = vmatprep.subr.bf16.mxu0 0
        %595 = vmatpush1.bf16.msra.mxu0 0
        %596 = vmatprep.subr.bf16.mxu0 0
        %597 = vmatpush1.bf16.msra.mxu0 0
        %598 = vmatprep.subr.bf16.mxu0 0
        %599 = vmatpush1.bf16.msra.mxu0 0
        %600 = vmatprep.subr.bf16.mxu0 0
        %601 = vmatpush1.bf16.msra.mxu0 0
        %602 = vmatprep.subr.bf16.mxu0 0
        %603 = vmatpush1.bf16.msra.mxu0 %v586
        %604 = vmatprep.subr.bf16.mxu0 0
        %605 = vmatpush2.bf16.msra.mxu0 0
        %606 = vmatprep.subr.bf16.mxu0 0
        %607 = vmatpush2.bf16.msra.mxu0 0
        %608 = vmatprep.subr.bf16.mxu0 0
        %609 = vmatpush2.bf16.msra.mxu0 0
        %610 = vmatprep.subr.bf16.mxu0 0
        %611 = vmatpush2.bf16.msra.mxu0 0
        %612 = vmatprep.subr.bf16.mxu0 0
        %613 = vmatpush2.bf16.msra.mxu0 0
        %614 = vmatprep.subr.bf16.mxu0 0
        %615 = vmatpush2.bf16.msra.mxu0 0
        %616 = vmatprep.subr.bf16.mxu0 0
        %617 = vmatpush2.bf16.msra.mxu0 0
        %618 = vmatprep.subr.bf16.mxu0 0
        %619 = vmatpush2.bf16.msra.mxu0 0
        %620 = vmatprep.mubr.bf16.mxu0 0
        %621 = vmatmul.mubr.bf16.gmra.mxu0 %v583
        %v622 = vpop.f32.mrf.mxu0
        %v623 = vadd.f32 0.0, %v622
        %v624 = vpop.f32.mrf.mxu0
        %v625 = vpop.f32.mrf.mxu0
        %v626 = vpop.f32.mrf.mxu0
        %627 = vdwg.mxu0
        %v628 = vlaneseq
        %v629 = vshrl.u32 %v628, 7
        %v630 = vsub.s32 0, %v629
        %v631 = vrot.slane %v491, %v630
        %v632 = vmul.f32 %v623, %v631
        %v633 = vlaneseq
        %v634 = vshrl.u32 %v633, 7
        %v635 = vsub.s32 1, %v634
        %v636 = vrot.slane %v491, %v635
        %v637 = vmul.f32 %v623, %v636
        %v639 = vrot.slane %v637, 4
        %v641 = vadd.f32 %v632, %v639
        %v647 = vunpack.c.l.b16 %v492
        %v648 = vunpack.c.l.b16 %v493
        %v649 = vunpack.c.l.b16 %v494
        %v650 = vunpack.c.l.b16 %v495
        %v651 = vunpack.c.l.b16 %v496
        %v652 = vpack.c.b16 %v648, %v647
        %v653 = vpack.c.b16 %v650, %v649
        %v654 = vpack.c.b16 %v651, %v651
        %v656 = vsel %vm567, %v652, 0
        %v659 = vsel %vm567, %v653, 0
        %v662 = vsel %vm567, %v654, 0
        %664 = vmatprep.subr.bf16.mxu0 0
        %665 = vmatpush1.bf16.msra.mxu0 0
        %666 = vmatprep.subr.bf16.mxu0 0
        %667 = vmatpush1.bf16.msra.mxu0 0
        %668 = vmatprep.subr.bf16.mxu0 0
        %669 = vmatpush1.bf16.msra.mxu0 0
        %670 = vmatprep.subr.bf16.mxu0 0
        %671 = vmatpush1.bf16.msra.mxu0 0
        %672 = vmatprep.subr.bf16.mxu0 0
        %673 = vmatpush1.bf16.msra.mxu0 0
        %674 = vmatprep.subr.bf16.mxu0 0
        %675 = vmatpush1.bf16.msra.mxu0 0
        %676 = vmatprep.subr.bf16.mxu0 0
        %677 = vmatpush1.bf16.msra.mxu0 0
        %678 = vmatprep.subr.bf16.mxu0 0
        %679 = vmatpush1.bf16.msra.mxu0 %v586
        %680 = vmatprep.subr.bf16.mxu0 0
        %681 = vmatpush2.bf16.msra.mxu0 0
        %682 = vmatprep.subr.bf16.mxu0 0
        %683 = vmatpush2.bf16.msra.mxu0 0
        %684 = vmatprep.subr.bf16.mxu0 0
        %685 = vmatpush2.bf16.msra.mxu0 0
        %686 = vmatprep.subr.bf16.mxu0 0
        %687 = vmatpush2.bf16.msra.mxu0 0
        %688 = vmatprep.subr.bf16.mxu0 0
        %689 = vmatpush2.bf16.msra.mxu0 0
        %690 = vmatprep.subr.bf16.mxu0 0
        %691 = vmatpush2.bf16.msra.mxu0 0
        %692 = vmatprep.subr.bf16.mxu0 0
        %693 = vmatpush2.bf16.msra.mxu0 0
        %694 = vmatprep.subr.bf16.mxu0 0
        %695 = vmatpush2.bf16.msra.mxu0 0
        %696 = vmatprep.mubr.bf16.mxu0 0
        %697 = vmatmul.mubr.bf16.gmra.mxu0 %v656
        %v698 = vpop.f32.mrf.mxu0
        %v699 = vadd.f32 0.0, %v698
        %v700 = vpop.f32.mrf.mxu0
        %v701 = vpop.f32.mrf.mxu0
        %v702 = vadd.f32 0.0, %v701
        %v703 = vpop.f32.mrf.mxu0
        %704 = vmatprep.mubr.bf16.mxu0 0
        %705 = vmatmul.mubr.bf16.gmra.mxu0 %v659
        %v706 = vpop.f32.mrf.mxu0
        %v707 = vadd.f32 0.0, %v706
        %v708 = vpop.f32.mrf.mxu0
        %v709 = vpop.f32.mrf.mxu0
        %v710 = vadd.f32 0.0, %v709
        %v711 = vpop.f32.mrf.mxu0
        %712 = vmatprep.mubr.bf16.mxu0 0
        %713 = vmatmul.mubr.bf16.gmra.mxu0 %v662
        %v714 = vpop.f32.mrf.mxu0
        %v715 = vadd.f32 0.0, %v714
        %v716 = vpop.f32.mrf.mxu0
        %v717 = vpop.f32.mrf.mxu0
        %v718 = vpop.f32.mrf.mxu0
        %719 = vdwg.mxu0
        %v720 = vlaneseq
        %v721 = vshrl.u32 %v720, 7
        %v722 = vsub.s32 0, %v721
        %v723 = vrot.slane %v497, %v722
        %v724 = vmul.f32 %v699, %v723
        %v725 = vlaneseq
        %v726 = vshrl.u32 %v725, 7
        %v727 = vsub.s32 1, %v726
        %v728 = vrot.slane %v497, %v727
        %v729 = vmul.f32 %v699, %v728
        %v731 = vrot.slane %v729, 4
        %v733 = vadd.f32 %v724, %v731
        %v734 = vlaneseq
        %v735 = vshrl.u32 %v734, 7
        %v736 = vsub.s32 2, %v735
        %v737 = vrot.slane %v497, %v736
        %v738 = vmul.f32 %v702, %v737
        %v739 = vadd.f32 %v733, %v738
        %v740 = vlaneseq
        %v741 = vshrl.u32 %v740, 7
        %v742 = vsub.s32 3, %v741
        %v743 = vrot.slane %v497, %v742
        %v744 = vmul.f32 %v702, %v743
        %v746 = vrot.slane %v744, 4
        %v748 = vadd.f32 %v739, %v746
        %v749 = vlaneseq
        %v750 = vshrl.u32 %v749, 7
        %v751 = vsub.s32 4, %v750
        %v752 = vrot.slane %v497, %v751
        %v753 = vmul.f32 %v707, %v752
        %v754 = vadd.f32 %v748, %v753
        %v755 = vlaneseq
        %v756 = vshrl.u32 %v755, 7
        %v757 = vsub.s32 5, %v756
        %v758 = vrot.slane %v497, %v757
        %v759 = vmul.f32 %v707, %v758
        %v761 = vrot.slane %v759, 4
        %v763 = vadd.f32 %v754, %v761
        %v764 = vlaneseq
        %v765 = vshrl.u32 %v764, 7
        %v766 = vsub.s32 6, %v765
        %v767 = vrot.slane %v497, %v766
        %v768 = vmul.f32 %v710, %v767
        %v769 = vadd.f32 %v763, %v768
        %v770 = vlaneseq
        %v771 = vshrl.u32 %v770, 7
        %v772 = vsub.s32 7, %v771
        %v773 = vrot.slane %v497, %v772
        %v774 = vmul.f32 %v710, %v773
        %v776 = vrot.slane %v774, 4
        %v778 = vadd.f32 %v769, %v776
        %v779 = vlaneseq
        %v780 = vshrl.u32 %v779, 7
        %v781 = vsub.s32 0, %v780
        %v782 = vrot.slane %v498, %v781
        %v783 = vmul.f32 %v715, %v782
        %v784 = vadd.f32 %v778, %v783
        %v786 = vlaneseq
        %v787 = vshrl.u32 %v786, 7
        %v788 = vsub.s32 0, %v787
        %v789 = vrot.slane %v499, %v788
        %v791 = vadd.f32 %v784, %v789
        %v792 = vadd.f32 %v641, %v791
        %v793 = vmax.f32 %v792, 0.0
        %v795 = vrot.slane %v504, 4
        %v797 = vsel %vm513, %v795, %v509
        %v798 = vpack.c.bf16 %v797, %v797
        %v799 = vrot.slane %v489, 2
        %800 = vrot.lane.b32.xlu0 %v799, 120
        %v801 = vpop.permute.xlu0 %800
        %v803 = vsel %vm519, %v798, 0
        %v806 = vsel %vm519, %v801, 0
        %808 = vmatprep.subr.bf16.mxu0 0
        %809 = vmatpush1.bf16.xpose.msra.mxu0 0
        %810 = vmatprep.subr.bf16.mxu0 0
        %811 = vmatpush1.bf16.xpose.msra.mxu0 0
        %812 = vmatprep.subr.bf16.mxu0 0
        %813 = vmatpush1.bf16.xpose.msra.mxu0 0
        %814 = vmatprep.subr.bf16.mxu0 0
        %815 = vmatpush1.bf16.xpose.msra.mxu0 0
        %816 = vmatprep.subr.bf16.mxu0 0
        %817 = vmatpush1.bf16.xpose.msra.mxu0 0
        %818 = vmatprep.subr.bf16.mxu0 0
        %819 = vmatpush1.bf16.xpose.msra.mxu0 0
        %820 = vmatprep.subr.bf16.mxu0 0
        %821 = vmatpush1.bf16.xpose.msra.mxu0 0
        %822 = vmatprep.subr.bf16.mxu0 0
        %823 = vmatpush1.bf16.xpose.msra.mxu0 %v806
        %824 = vmatprep.subr.bf16.mxu0 0
        %825 = vmatpush2.bf16.xpose.msra.mxu0 0
        %826 = vmatprep.subr.bf16.mxu0 0
        %827 = vmatpush2.bf16.xpose.msra.mxu0 0
        %828 = vmatprep.subr.bf16.mxu0 0
        %829 = vmatpush2.bf16.xpose.msra.mxu0 0
        %830 = vmatprep.subr.bf16.mxu0 0
        %831 = vmatpush2.bf16.xpose.msra.mxu0 0
        %832 = vmatprep.subr.bf16.mxu0 0
        %833 = vmatpush2.bf16.xpose.msra.mxu0 0
        %834 = vmatprep.subr.bf16.mxu0 0
        %835 = vmatpush2.bf16.xpose.msra.mxu0 0
        %836 = vmatprep.subr.bf16.mxu0 0
        %837 = vmatpush2.bf16.xpose.msra.mxu0 0
        %838 = vmatprep.subr.bf16.mxu0 0
        %839 = vmatpush2.bf16.xpose.msra.mxu0 0
        %840 = vmatprep.mubr.bf16.mxu0 0
        %841 = vmatmul.mubr.bf16.gmra.mxu0 %v803
        %v842 = vpop.f32.mrf.mxu0
        %v843 = vadd.f32 0.0, %v842
        %v844 = vpop.f32.mrf.mxu0
        %v845 = vpop.f32.mrf.mxu0
        %v846 = vpop.f32.mrf.mxu0
        %847 = vdwg.mxu0
        %v848 = vmul.f32 %v843, 0.5
        %v849 = vsel %vm567, %v848, -inf
        %850 = vmax.xlane.f32.xlu0 %v849
        %v851 = vpop.xlane.xlu0 %850
        %v852 = vsub.f32 %v848, %v851
        %v853 = vmul.f32 %v852, 1.442695
        %v854 = vpow.pop %v853
        %v855 = vsel %vm567, %v854, 0.0
        %856 = vadd.xlane.f32.xlu0 %v855
        %v857 = vpop.xlane.xlu0 %856
        %v858 = vrcp.pop %v857
        %v859 = vmul.f32 %v854, %v858
        %v860 = vpack.c.bf16 %v859, %v859
        %861 = vrot.lane.b32.xlu0 %v799, 112
        %v862 = vpop.permute.xlu0 %861
        %v864 = vsel %vm567, %v860, 0
        %v867 = vsel %vm427, %v862, 0
        %869 = vmatprep.subr.bf16.mxu0 0
        %870 = vmatpush1.bf16.msra.mxu0 0
        %871 = vmatprep.subr.bf16.mxu0 0
        %872 = vmatpush1.bf16.msra.mxu0 0
        %873 = vmatprep.subr.bf16.mxu0 0
        %874 = vmatpush1.bf16.msra.mxu0 0
        %875 = vmatprep.subr.bf16.mxu0 0
        %876 = vmatpush1.bf16.msra.mxu0 0
        %877 = vmatprep.subr.bf16.mxu0 0
        %878 = vmatpush1.bf16.msra.mxu0 0
        %879 = vmatprep.subr.bf16.mxu0 0
        %880 = vmatpush1.bf16.msra.mxu0 0
        %881 = vmatprep.subr.bf16.mxu0 0
        %882 = vmatpush1.bf16.msra.mxu0 0
        %883 = vmatprep.subr.bf16.mxu0 0
        %884 = vmatpush1.bf16.msra.mxu0 %v867
        %885 = vmatprep.subr.bf16.mxu0 0
        %886 = vmatpush2.bf16.msra.mxu0 0
        %887 = vmatprep.subr.bf16.mxu0 0
        %888 = vmatpush2.bf16.msra.mxu0 0
        %889 = vmatprep.subr.bf16.mxu0 0
        %890 = vmatpush2.bf16.msra.mxu0 0
        %891 = vmatprep.subr.bf16.mxu0 0
        %892 = vmatpush2.bf16.msra.mxu0 0
        %893 = vmatprep.subr.bf16.mxu0 0
        %894 = vmatpush2.bf16.msra.mxu0 0
        %895 = vmatprep.subr.bf16.mxu0 0
        %896 = vmatpush2.bf16.msra.mxu0 0
        %897 = vmatprep.subr.bf16.mxu0 0
        %898 = vmatpush2.bf16.msra.mxu0 0
        %899 = vmatprep.subr.bf16.mxu0 0
        %900 = vmatpush2.bf16.msra.mxu0 0
        %901 = vmatprep.mubr.bf16.mxu0 0
        %902 = vmatmul.mubr.bf16.gmra.mxu0 %v864
        %v903 = vpop.f32.mrf.mxu0
        %v904 = vadd.f32 0.0, %v903
        %v905 = vpop.f32.mrf.mxu0
        %v906 = vpop.f32.mrf.mxu0
        %v907 = vpop.f32.mrf.mxu0
        %908 = vdwg.mxu0
        %v909 = vmul.f32 %v904, %v631
        %v910 = vmul.f32 %v904, %v636
        %v912 = vrot.slane %v910, 4
        %v914 = vadd.f32 %v909, %v912
        %915 = vmatprep.subr.bf16.mxu0 0
        %916 = vmatpush1.bf16.msra.mxu0 0
        %917 = vmatprep.subr.bf16.mxu0 0
        %918 = vmatpush1.bf16.msra.mxu0 0
        %919 = vmatprep.subr.bf16.mxu0 0
        %920 = vmatpush1.bf16.msra.mxu0 0
        %921 = vmatprep.subr.bf16.mxu0 0
        %922 = vmatpush1.bf16.msra.mxu0 0
        %923 = vmatprep.subr.bf16.mxu0 0
        %924 = vmatpush1.bf16.msra.mxu0 0
        %925 = vmatprep.subr.bf16.mxu0 0
        %926 = vmatpush1.bf16.msra.mxu0 0
        %927 = vmatprep.subr.bf16.mxu0 0
        %928 = vmatpush1.bf16.msra.mxu0 0
        %929 = vmatprep.subr.bf16.mxu0 0
        %930 = vmatpush1.bf16.msra.mxu0 %v867
        %931 = vmatprep.subr.bf16.mxu0 0
        %932 = vmatpush2.bf16.msra.mxu0 0
        %933 = vmatprep.subr.bf16.mxu0 0
        %934 = vmatpush2.bf16.msra.mxu0 0
        %935 = vmatprep.subr.bf16.mxu0 0
        %936 = vmatpush2.bf16.msra.mxu0 0
        %937 = vmatprep.subr.bf16.mxu0 0
        %938 = vmatpush2.bf16.msra.mxu0 0
        %939 = vmatprep.subr.bf16.mxu0 0
        %940 = vmatpush2.bf16.msra.mxu0 0
        %941 = vmatprep.subr.bf16.mxu0 0
        %942 = vmatpush2.bf16.msra.mxu0 0
        %943 = vmatprep.subr.bf16.mxu0 0
        %944 = vmatpush2.bf16.msra.mxu0 0
        %945 = vmatprep.subr.bf16.mxu0 0
        %946 = vmatpush2.bf16.msra.mxu0 0
        %947 = vmatprep.mubr.bf16.mxu0 0
        %948 = vmatmul.mubr.bf16.gmra.mxu0 %v656
        %v949 = vpop.f32.mrf.mxu0
        %v950 = vadd.f32 0.0, %v949
        %v951 = vpop.f32.mrf.mxu0
        %v952 = vpop.f32.mrf.mxu0
        %v953 = vadd.f32 0.0, %v952
        %v954 = vpop.f32.mrf.mxu0
        %955 = vmatprep.mubr.bf16.mxu0 0
        %956 = vmatmul.mubr.bf16.gmra.mxu0 %v659
        %v957 = vpop.f32.mrf.mxu0
        %v958 = vadd.f32 0.0, %v957
        %v959 = vpop.f32.mrf.mxu0
        %v960 = vpop.f32.mrf.mxu0
        %v961 = vadd.f32 0.0, %v960
        %v962 = vpop.f32.mrf.mxu0
        %963 = vmatprep.mubr.bf16.mxu0 0
        %964 = vmatmul.mubr.bf16.gmra.mxu0 %v662
        %v965 = vpop.f32.mrf.mxu0
        %v966 = vadd.f32 0.0, %v965
        %v967 = vpop.f32.mrf.mxu0
        %v968 = vpop.f32.mrf.mxu0
        %v969 = vpop.f32.mrf.mxu0
        %970 = vdwg.mxu0
        %v971 = vmul.f32 %v950, %v723
        %v972 = vmul.f32 %v950, %v728
        %v974 = vrot.slane %v972, 4
        %v976 = vadd.f32 %v971, %v974
        %v977 = vmul.f32 %v953, %v737
        %v978 = vadd.f32 %v976, %v977
        %v979 = vmul.f32 %v953, %v743
        %v981 = vrot.slane %v979, 4
        %v983 = vadd.f32 %v978, %v981
        %v984 = vmul.f32 %v958, %v752
        %v985 = vadd.f32 %v983, %v984
        %v986 = vmul.f32 %v958, %v758
        %v988 = vrot.slane %v986, 4
        %v990 = vadd.f32 %v985, %v988
        %v991 = vmul.f32 %v961, %v767
        %v992 = vadd.f32 %v990, %v991
        %v993 = vmul.f32 %v961, %v773
        %v995 = vrot.slane %v993, 4
        %v997 = vadd.f32 %v992, %v995
        %v998 = vmul.f32 %v966, %v782
        %v999 = vadd.f32 %v997, %v998
        %v1000 = vadd.f32 %v999, %v789
        %v1001 = vadd.f32 %v914, %v1000
        %v1002 = vmax.f32 %v1001, 0.0
        %v1004 = vrot.slane %v1002, 4
        %v1006 = vsel %vm513, %v793, %v1004
        %v1007 = vpack.c.bf16 %v1006, %v1006
        %v1008 = vld [vmem:[%s8] sm:$0xf]
        %v1009 = vld [vmem:[%s8 + $0x4] sm:$0xf]
        %v1010 = vld [vmem:[%s9] sm:$0x1]
        %v1012 = vlaneseq
        %v1013 = vshrl.u32 %v1012, 7
        %v1014 = vsub.s32 0, %v1013
        %v1015 = vrot.slane %v1010, %v1014
        %v1019 = vunpack.c.l.b16 %v1008
        %v1020 = vunpack.c.l.b16 %v1009
        %v1021 = vpack.c.b16 %v1020, %v1019
        %v1024 = vsel %vm446, %v1007, 0
        %1026 = vmatprep.subr.bf16.mxu0 0
        %1027 = vmatpush1.bf16.msra.mxu0 0
        %1028 = vmatprep.subr.bf16.mxu0 0
        %1029 = vmatpush1.bf16.msra.mxu0 0
        %1030 = vmatprep.subr.bf16.mxu0 0
        %1031 = vmatpush1.bf16.msra.mxu0 0
        %1032 = vmatprep.subr.bf16.mxu0 0
        %1033 = vmatpush1.bf16.msra.mxu0 0
        %1034 = vmatprep.subr.bf16.mxu0 0
        %1035 = vmatpush1.bf16.msra.mxu0 0
        %1036 = vmatprep.subr.bf16.mxu0 0
        %1037 = vmatpush1.bf16.msra.mxu0 0
        %1038 = vmatprep.subr.bf16.mxu0 0
        %1039 = vmatpush1.bf16.msra.mxu0 0
        %1040 = vmatprep.subr.bf16.mxu0 0
        %1041 = vmatpush1.bf16.msra.mxu0 %v1021
        %1042 = vmatprep.subr.bf16.mxu0 0
        %1043 = vmatpush2.bf16.msra.mxu0 0
        %1044 = vmatprep.subr.bf16.mxu0 0
        %1045 = vmatpush2.bf16.msra.mxu0 0
        %1046 = vmatprep.subr.bf16.mxu0 0
        %1047 = vmatpush2.bf16.msra.mxu0 0
        %1048 = vmatprep.subr.bf16.mxu0 0
        %1049 = vmatpush2.bf16.msra.mxu0 0
        %1050 = vmatprep.subr.bf16.mxu0 0
        %1051 = vmatpush2.bf16.msra.mxu0 0
        %1052 = vmatprep.subr.bf16.mxu0 0
        %1053 = vmatpush2.bf16.msra.mxu0 0
        %1054 = vmatprep.subr.bf16.mxu0 0
        %1055 = vmatpush2.bf16.msra.mxu0 0
        %1056 = vmatprep.subr.bf16.mxu0 0
        %1057 = vmatpush2.bf16.msra.mxu0 0
        %1058 = vmatprep.mubr.bf16.mxu0 0
        %1059 = vmatmul.mubr.bf16.gmra.mxu0 %v1024
        %v1060 = vpop.f32.mrf.mxu0
        %v1061 = vadd.f32 %v1015, %v1060
        %v1062 = vpop.f32.mrf.mxu0
        %v1063 = vpop.f32.mrf.mxu0
        %v1064 = vpop.f32.mrf.mxu0
        %1065 = vdwg.mxu0
        %vm1066 = vcmask 125952
        %1067 = vst.msk [vmem:[%s406] sm:$0xf] %vm1066, %v1061
        %s1068 = scalar_lea.vmem %s406, 4 [#allocation10]
        %vm1069 = vcmask 130052
        %1070 = vst.msk [vmem:[%s1068 - $0x4] sm:$0xf0] %vm1069, %v1061
        %s1071 = sand.u32 %s250, 1
        %s1072 = scalar_lea.sflag [#allocation4], %s1071
        %s1073 = sand.u32 %s250, 1
        %s1074 = smul.addr %s1073, 8
        %s1075 = scalar_lea.vmem [#allocation10], %s1074
        // Predicated region
        $region77: #{tpu_custom_call.1} parent=59 // pred_check
          %p1076 = pneg %p260
        $region78: #{tpu_custom_call.1} parent=59 // pred_check_branch
          %1078 = sbr.rel (%p1076) target = $region80
        $region79: #{tpu_custom_call.1} parent=59 // pred_region
          %s1079 = smul.u32 2, %s27
          %s1081 = ssub.s32 128, 128
          %1082 = vsyncadd %s1072, %s1081
          %s1083 = smul.addr %s1079, 64
          %s1084 = scalar_lea.hbm %s10, %s1083
          %s1085 = sshll.u32 %s1075, 4
          %s1086 = int_to_ptr.vmem [resolvable:$true] %s1085
          %1091 = dma.vmem_to_hbm [thread:$0]  %s1086, 128, %s1084, %s1072, 64, 64, 4
        $region80: #{tpu_custom_call.1} parent=59 // pred_fallthru
          _
      $region60: #{tpu_custom_call.1} parent=5 // pred_fallthru
        _
      %p1092 = scmp.le.s32.totalorder 2, %s22
      // Predicated region
      $region81: #{tpu_custom_call.1} parent=5 // pred_check
        %p1093 = pneg %p1092
      $region82: #{tpu_custom_call.1} parent=5 // pred_check_branch
        %1095 = sbr.rel (%p1093) target = $region84
      $region83: #{tpu_custom_call.1} parent=5 // pred_region
        %s1096 = ssub.s32 %s22, 2
        // Predicated region
        $region85: #{tpu_custom_call.1} parent=83 // pred_check
          %p1097 = pneg %p266
        $region86: #{tpu_custom_call.1} parent=83 // pred_check_branch
          %1099 = sbr.rel (%p1097) target = $region88
        $region87: #{tpu_custom_call.1} parent=83 // pred_region
          %s1100 = sand.u32 %s251, 1
          %s1101 = scalar_lea.sflag [#allocation4], %s1100
          %s1102 = sand.u32 %s251, 1
          %s1103 = smul.addr %s1102, 8
          %s1104 = scalar_lea.vmem [#allocation10], %s1103
          %1105 = dma.done %s1101, 128
        $region88: #{tpu_custom_call.1} parent=83 // pred_fallthru
          _
      $region84: #{tpu_custom_call.1} parent=5 // pred_fallthru
        _
    $region6: #{tpu_custom_call.1} parent=1 // loop_footer
      %s26 = sadd.s32 1, %s22
    $region7: #{tpu_custom_call.1} parent=1 // loop_footer_branch
      %21 = sbr.rel target = $region3
    $region8: #{tpu_custom_call.1} parent=1 // loop_exit
      _
    %1106 = vsyncpa [#allocation3], 1
    %s1107 = scalar_lea.sflag [#allocation3], 1
    %1108 = vsyncpa %s1107, 1
    %1109 = vsyncpa [#allocation6], 1
    %1110 = vsyncpa [#allocation9], 1
    %1111 = vsyncpa [#allocation4], 1
    %s1112 = scalar_lea.sflag [#allocation4], 1
    %1113 = vsyncpa %s1112, 1

</llo_original>
